<compile_context>
chip_gen: v7x
topology: tpu7x:2x2x1
jax: 0.10.0
libtpu: 0.0.40
codegen_flags: <defaults>
</compile_context>

<pallas_src>
import functools

import numpy as np
import jax
import jax.numpy as jnp
from jax.experimental import pallas as pl
from jax.experimental.pallas import tpu as pltpu

_F32 = jnp.float32
_BF16 = jnp.bfloat16


# ----------------------------------------------------------------------------
# Shared in-kernel helpers
# ----------------------------------------------------------------------------
def _layer_norm_channels(x, w, b):
    """LayerNorm over the channel (sublane) axis, per spatial position."""
    mean = jnp.mean(x, axis=0, keepdims=True)
    cen = x - mean
    var = jnp.mean(cen * cen, axis=0, keepdims=True)
    return cen * jax.lax.rsqrt(var + 1e-5) * w + b


def _dwconv3x3(conv_in_e, taps, *, W, S, first_tile, last_tile):
    """3x3 depthwise conv (padding=1) on a row-haloed tile.

    conv_in_e : (rows, Se) f32, Se = S + 2W + 2, lane layout
                [pad(1) | prev row (W) | tile rows (S) | next row (W) | pad(1)]
    taps      : (rows, 9), tap k = (dy+1)*3 + (dx+1)
    Returns   : (rows, S) conv outputs for the central tile positions.
    """
    Se = S + 2 * W + 2
    lane = jax.lax.broadcasted_iota(jnp.int32, (1, Se), 1)
    col = (lane - 1) % W                         # source column within its row

    # Image-boundary halo rows must be zero *after* the 1x1 projection
    # (conv zero-padding), so mask the conv input there.
    vp = jnp.where(first_tile, 0.0, 1.0).astype(jnp.float32)
    vn = jnp.where(last_tile, 0.0, 1.0).astype(jnp.float32)
    bmask = (jnp.where((lane >= 1) & (lane < 1 + W), vp, 1.0)
             * jnp.where((lane >= 1 + W + S) & (lane < 1 + W + S + W), vn, 1.0)
             ).astype(jnp.float32)

    v0 = conv_in_e * bmask
    # Pre-masked horizontal variants, reused across all three dy taps
    # (source-column validity: dx=-1 taps may not read the last column of a row,
    #  dx=+1 taps may not read the first column).
    vL = v0 * (col != W - 1).astype(jnp.float32)
    vR = v0 * (col != 0).astype(jnp.float32)
    pieces = (vL, v0, vR)

    base = W + 1                                 # extended index of tile pos 0
    out = None
    for k in range(9):
        dy, dx = k // 3 - 1, k % 3 - 1
        start = base + dy * W + dx               # static slice per tap
        contrib = taps[:, k:k + 1] * pieces[dx + 1][:, start:start + S]
        out = contrib if out is None else out + contrib
    return out


# ----------------------------------------------------------------------------
# Pass 1: LN1 + qkv 1x1 + depthwise conv; emit v tiles and the global
#         block-diagonal attention matrix (accumulated over HW tiles).
# ----------------------------------------------------------------------------
def _mdta_qkv_kernel(xc_ref, xh_ref, ln1_w_ref, ln1_b_ref, qkv_w_ref,
                     qkv_dw_ref, temp_ref, hmask_ref,
                     v_ref, attn_ref,
                     logits_acc, sq_acc, sk_acc,
                     *, C, W, S):
    t = pl.program_id(1)
    n_t = pl.num_programs(1)

    # Extended tile: [pad | prev row | tile | next row | pad]
    x_e = jnp.concatenate(
        [xh_ref[:, :W + 1], xc_ref[...], xh_ref[:, W + 1:]], axis=1)

    xn_e = _layer_norm_channels(x_e, ln1_w_ref[...], ln1_b_ref[...])

    # 1x1 qkv projection (MXU, bf16 operands, f32 accumulation)
    qkv_e = jnp.dot(qkv_w_ref[...], xn_e.astype(_BF16),
                    preferred_element_type=_F32)                  # (3C, Se)

    qkv_c = _dwconv3x3(qkv_e, qkv_dw_ref[...], W=W, S=S,
                       first_tile=(t == 0), last_tile=(t == n_t - 1))

    q = qkv_c[0:C]
    k = qkv_c[C:2 * C]
    v = qkv_c[2 * C:3 * C]

    v_ref[...] = v.astype(v_ref.dtype)                            # bf16 tile out

    @pl.when(t == 0)
    def _():
        logits_acc[...] = jnp.zeros_like(logits_acc)
        sq_acc[...] = jnp.zeros_like(sq_acc)
        sk_acc[...] = jnp.zeros_like(sk_acc)

    sq_acc[...] += jnp.sum(q * q, axis=1, keepdims=True)
    sk_acc[...] += jnp.sum(k * k, axis=1, keepdims=True)
    # Full (C, C) q.k^T on the MXU (block-diagonal structure applied later).
    logits_acc[...] += jax.lax.dot_general(
        q.astype(_BF16), k.astype(_BF16), (((1,), (1,)), ((), ())),
        preferred_element_type=_F32)

    @pl.when(t == n_t - 1)
    def _():
        # L2 normalization of q/k rows and per-head temperature, all in f32.
        inv_q = jax.lax.rsqrt(jnp.maximum(sq_acc[...], 1e-24))    # (C, 1)
        inv_k = jax.lax.rsqrt(jnp.maximum(sk_acc[...], 1e-24))
        lg = logits_acc[...] * inv_q * jnp.transpose(inv_k) * temp_ref[...]
        # Block-diagonal (per-head) softmax.
        lg = jnp.where(hmask_ref[...] > 0.5, lg, -1e30)
        lg = lg - jnp.max(lg, axis=1, keepdims=True)
        e = jnp.exp(lg)
        attn = e / jnp.sum(e, axis=1, keepdims=True)              # exact divide
        attn_ref[...] = attn.astype(attn_ref.dtype)


# ----------------------------------------------------------------------------
# Pass 2: attn@V + project_out + residual, then LN2 + GDFN + residual.
# The MDTA tail is recomputed on the 1-row halo so the GDFN depthwise conv
# sees a consistent y halo; both grid axes are fully parallel.
# ----------------------------------------------------------------------------
def _attn_ffn_kernel(xc_ref, xh_ref, vc_ref, vh_ref, attn_ref,
                     attn_po_ref, ln2_w_ref, ln2_b_ref,
                     ffn_in_ref, ffn_dw_ref, ffn_po_ref,
                     out_ref,
                     *, W, S, hidden):
    t = pl.program_id(1)
    n_t = pl.num_programs(1)
    base = W + 1

    x_e = jnp.concatenate(
        [xh_ref[:, :W + 1], xc_ref[...], xh_ref[:, W + 1:]], axis=1)   # f32
    v_e = jnp.concatenate(
        [vh_ref[:, :W + 1], vc_ref[...], vh_ref[:, W + 1:]], axis=1)   # bf16

    attn_b = attn_ref[...].astype(_BF16)                               # (C, C)

    # MDTA tail on tile + halo.
    o_e = jnp.dot(attn_b, v_e, preferred_element_type=_F32)            # (C, Se)
    y_e = x_e + jnp.dot(attn_po_ref[...], o_e.astype(_BF16),
                        preferred_element_type=_F32)

    # GDFN.
    yn_e = _layer_norm_channels(y_e, ln2_w_ref[...], ln2_b_ref[...])
    h2_e = jnp.dot(ffn_in_ref[...], yn_e.astype(_BF16),
                   preferred_element_type=_F32)                        # (2h, Se)
    h2_c = _dwconv3x3(h2_e, ffn_dw_ref[...], W=W, S=S,
                      first_tile=(t == 0), last_tile=(t == n_t - 1))   # (2h, S)

    x1 = h2_c[0:hidden]
    x2 = h2_c[hidden:2 * hidden]
    # Exact-erf GELU to match F.gelu(approximate=False).
    # TODO(synk): tanh-approx GELU would move this off the VALU onto the EUP.
    g = 0.5 * x1 * (1.0 + jax.lax.erf(x1 * 0.7071067811865476))
    ffn_out = jnp.dot(ffn_po_ref[...], (g * x2).astype(_BF16),
                      preferred_element_type=_F32)                     # (C, S)

    out_ref[...] = (y_e[:, base:base + S] + ffn_out).astype(out_ref.dtype)


# ----------------------------------------------------------------------------
# Wrapper: tiling choice, halo extraction, BlockSpecs, pallas_call plumbing.
# ----------------------------------------------------------------------------
def _pick_tile_rows(H, W, C, hidden):
    """Largest lane-dense row tile whose f32 working set fits a VMEM budget."""
    budget = 20 * (1 << 20)
    cand = [r for r in range(1, H + 1) if H % r == 0 and (r * W) % 128 == 0]
    if not cand:
        return H                       # fallback: single (lane-masked) tile

    def est_bytes(r):
        se = r * W + 2 * W + 2
        rows = 3 * C + 2 * hidden + 6 * C
        return 4 * se * rows * 3       # conv input + 2 masked variants, rough

    fitting = [r for r in cand if est_bytes(r) <= budget]
    return max(fitting) if fitting else min(cand)


def _row_halo(arr_bchw, R):
    """Per row-tile halo: (B, n_tiles, C, 2W+2) = [0 | prev row | next row | 0]."""
    B, C, H, W = arr_bchw.shape
    n = H // R
    dt = arr_bchw.dtype
    zrow = jnp.zeros((B, C, 1, W), dt)
    prev = jnp.concatenate([zrow, arr_bchw[:, :, R - 1:H - 1:R, :]], axis=2)
    nxt = jnp.concatenate([arr_bchw[:, :, R:H:R, :], zrow], axis=2)
    prev = jnp.transpose(prev, (0, 2, 1, 3))       # (B, n, C, W)
    nxt = jnp.transpose(nxt, (0, 2, 1, 3))
    zcol = jnp.zeros((B, n, C, 1), dt)
    return jnp.concatenate([zcol, prev, nxt, zcol], axis=3)


def _resident_spec(shape):
    """Constant-index (resident) weight: single-buffered when supported."""
    n = len(shape)
    idx = lambda b, t, n=n: (0,) * n
    buffered = getattr(pl, "Buffered", None)
    if buffered is not None:
        try:
            return pl.BlockSpec(shape, idx, pipeline_mode=buffered(1))
        except TypeError:
            pass
    return pl.BlockSpec(shape, idx)


def transformer_block(x, params, *, num_heads, expansion_factor, tile_rows=None):
    B, C, H, W = x.shape
    HW = H * W
    hidden = int(C * expansion_factor)
    d = C // num_heads

    (ln1_w, ln1_b, qkv_w, qkv_dw, temp, attn_po_w,
     ln2_w, ln2_b, ffn_in_w, ffn_dw, ffn_po_w) = params

    R = tile_rows if tile_rows is not None else _pick_tile_rows(H, W, C, hidden)
    assert H % R == 0, "tile_rows must divide H"
    n_tiles = H // R
    S = R * W

    # Batch-invariant small tensors.
    temp_col = jnp.repeat(jnp.asarray(temp, _F32).reshape(num_heads), d
                          ).reshape(C, 1)
    head_id = np.arange(C) // d
    hmask = jnp.asarray((head_id[:, None] == head_id[None, :]).astype(np.float32))

    x_flat = x.reshape(B, C, HW)
    x_halo = _row_halo(x, R)                                   # (B, n, C, 2W+2)

    qkv_w_b = qkv_w.astype(_BF16)
    attn_po_b = attn_po_w.astype(_BF16)
    ffn_in_b = ffn_in_w.astype(_BF16)
    ffn_po_b = ffn_po_w.astype(_BF16)

    def tile_spec():
        return pl.BlockSpec((None, C, S), lambda b, t: (b, 0, t))

    def halo_spec():
        return pl.BlockSpec((None, None, C, 2 * W + 2), lambda b, t: (b, t, 0, 0))

    vmem_limit = 64 * 1024 * 1024

    # ---- Pass 1: qkv path + attention matrix --------------------------------
    kernel1 = functools.partial(_mdta_qkv_kernel, C=C, W=W, S=S)
    v_arr, attn = pl.pallas_call(
        kernel1,
        grid=(B, n_tiles),
        in_specs=[tile_spec(), halo_spec(),
                  _resident_spec((C, 1)), _resident_spec((C, 1)),
                  _resident_spec((3 * C, C)), _resident_spec((3 * C, 9)),
                  _resident_spec((C, 1)), _resident_spec((C, C))],
        out_specs=[pl.BlockSpec((None, C, S), lambda b, t: (b, 0, t)),
                   pl.BlockSpec((None, C, C), lambda b, t: (b, 0, 0))],
        out_shape=[jax.ShapeDtypeStruct((B, C, HW), _BF16),
                   jax.ShapeDtypeStruct((B, C, C), _F32)],
        scratch_shapes=[pltpu.VMEM((C, C), _F32),
                        pltpu.VMEM((C, 1), _F32),
                        pltpu.VMEM((C, 1), _F32)],
        compiler_params=pltpu.CompilerParams(
            dimension_semantics=("parallel", "arbitrary"),
            vmem_limit_bytes=vmem_limit),
    )(x_flat, x_halo, ln1_w, ln1_b, qkv_w_b, qkv_dw, temp_col, hmask)

    # Halo rows of v for the GDFN pass (cheap jnp layout plumbing between calls).
    v_halo = _row_halo(v_arr.reshape(B, C, H, W), R)

    # ---- Pass 2: attention application + GDFN --------------------------------
    kernel2 = functools.partial(_attn_ffn_kernel, W=W, S=S, hidden=hidden)
    out = pl.pallas_call(
        kernel2,
        grid=(B, n_tiles),
        in_specs=[tile_spec(), halo_spec(),
                  tile_spec(), halo_spec(),
                  pl.BlockSpec((None, C, C), lambda b, t: (b, 0, 0)),
                  _resident_spec((C, C)),
                  _resident_spec((C, 1)), _resident_spec((C, 1)),
                  _resident_spec((2 * hidden, C)), _resident_spec((2 * hidden, 9)),
                  _resident_spec((C, hidden))],
        out_specs=pl.BlockSpec((None, C, S), lambda b, t: (b, 0, t)),
        out_shape=jax.ShapeDtypeStruct((B, C, HW), x.dtype),
        compiler_params=pltpu.CompilerParams(
            dimension_semantics=("parallel", "parallel"),
            vmem_limit_bytes=vmem_limit),
    )(x_flat, x_halo, v_arr, v_halo, attn,
      attn_po_b, ln2_w, ln2_b, ffn_in_b, ffn_dw, ffn_po_b)

    return out.reshape(B, C, H, W)


# ----------------------------------------------------------------------------
# Pure-JAX reference (mirrors the PyTorch module) for a correctness check.
# ----------------------------------------------------------------------------
def _reference(x, params, *, num_heads, expansion_factor):
    (ln1_w, ln1_b, qkv_w, qkv_dw, temp, attn_po_w,
     ln2_w, ln2_b, ffn_in_w, ffn_dw, ffn_po_w) = params
    B, C, H, W = x.shape
    hidden = int(C * expansion_factor)
    PREC = jax.lax.Precision.HIGHEST

    def layer_norm(v, w, b):
        mean = jnp.mean(v, axis=1, keepdims=True)
        var = jnp.mean((v - mean) ** 2, axis=1, keepdims=True)
        return ((v - mean) / jnp.sqrt(var + 1e-5)
                * w.reshape(1, C, 1, 1) + b.reshape(1, C, 1, 1))

    def conv1x1(v, w):
        return jnp.einsum("oc,bchw->bohw", w, v, precision=PREC)

    def dwconv(v, w9):
        Cv = v.shape[1]
        return jax.lax.conv_general_dilated(
            v, w9.reshape(Cv, 1, 3, 3), (1, 1), ((1, 1), (1, 1)),
            dimension_numbers=("NCHW", "OIHW", "NCHW"),
            feature_group_count=Cv, precision=PREC)

    def mdta(v):
        qkv = dwconv(conv1x1(v, qkv_w), qkv_dw)
        q, k, val = jnp.split(qkv, 3, axis=1)
        dh = C // num_heads
        rs = lambda t: t.reshape(B, num_heads, dh, H * W)
        q, k, val = rs(q), rs(k), rs(val)
        l2 = lambda t: t / jnp.maximum(
            jnp.linalg.norm(t, axis=-1, keepdims=True), 1e-12)
        q, k = l2(q), l2(k)
        logits = jnp.einsum("bhdn,bhen->bhde", q, k, precision=PREC)
        logits = logits * temp.reshape(1, num_heads, 1, 1)
        attn = jax.nn.softmax(logits, axis=-1)
        out = jnp.einsum("bhde,bhen->bhdn", attn, val,
                         precision=PREC).reshape(B, C, H, W)
        return conv1x1(out, attn_po_w)

    def gdfn(v):
        h2 = dwconv(conv1x1(v, ffn_in_w), ffn_dw)
        x1, x2 = jnp.split(h2, 2, axis=1)
        return conv1x1(jax.nn.gelu(x1, approximate=False) * x2, ffn_po_w)

    y = x + mdta(layer_norm(x, ln1_w, ln1_b))
    y = y + gdfn(layer_norm(y, ln2_w, ln2_b))
    return y


# ----------------------------------------------------------------------------
if __name__ == "__main__":
    B, C, H, W = 2, 16, 16, 16
    num_heads = 2
    expansion_factor = 2.0
    hidden = int(C * expansion_factor)

    key = jax.random.PRNGKey(0)
    keys = jax.random.split(key, 8)
    s = 0.1
    x = jax.random.normal(keys[0], (B, C, H, W), jnp.float32)

    params = (
        jnp.ones((C, 1), jnp.float32),                                 # ln1 w
        jnp.zeros((C, 1), jnp.float32),                                # ln1 b
        s * jax.random.normal(keys[1], (3 * C, C), jnp.float32),       # qkv 1x1
        s * jax.random.normal(keys[2], (3 * C, 9), jnp.float32),       # qkv dw
        jnp.ones((num_heads,), jnp.float32),                           # temperature
        s * jax.random.normal(keys[3], (C, C), jnp.float32),           # attn out
        jnp.ones((C, 1), jnp.float32),                                 # ln2 w
        jnp.zeros((C, 1), jnp.float32),                                # ln2 b
        s * jax.random.normal(keys[4], (2 * hidden, C), jnp.float32),  # ffn in
        s * jax.random.normal(keys[5], (2 * hidden, 9), jnp.float32),  # ffn dw
        s * jax.random.normal(keys[6], (C, hidden), jnp.float32),      # ffn out
    )

    y_ref = _reference(x, params, num_heads=num_heads,
                       expansion_factor=expansion_factor)

    # tile_rows=8 exercises multi-tile halos + logits accumulation;
    # tile_rows=None exercises the auto (single-tile here) path.
    for tr in (8, None):
        y = transformer_block(x, params, num_heads=num_heads,
                              expansion_factor=expansion_factor, tile_rows=tr)
        jax.block_until_ready(y)
        assert y.shape == x.shape and y.dtype == x.dtype
        # bf16 MXU operands with f32 accumulation vs full-f32 reference.
        np.testing.assert_allclose(np.asarray(y), np.asarray(y_ref),
                                   atol=1e-2, rtol=1e-2)

    print("KERNEL_OK")
</pallas_src>

<mosaic_0001>
module attributes {stable_mosaic.version = 11 : i64} {
  func.func @_mdta_qkv_kernel(%arg0: i32, %arg1: i32, %arg2: memref<1x16x128xf32, #tpu.memory_space<vmem>>, %arg3: memref<1x1x16x34xf32, #tpu.memory_space<vmem>>, %arg4: memref<16x1xf32, #tpu.memory_space<vmem>>, %arg5: memref<16x1xf32, #tpu.memory_space<vmem>>, %arg6: memref<48x16xbf16, #tpu.memory_space<vmem>>, %arg7: memref<48x9xf32, #tpu.memory_space<vmem>>, %arg8: memref<16x1xf32, #tpu.memory_space<vmem>>, %arg9: memref<16x16xf32, #tpu.memory_space<vmem>>, %arg10: memref<1x16x128xbf16, #tpu.memory_space<vmem>>, %arg11: memref<1x16x16xf32, #tpu.memory_space<vmem>>, %arg12: memref<16x16xf32, #tpu.memory_space<vmem>>, %arg13: memref<16x1xf32, #tpu.memory_space<vmem>>, %arg14: memref<16x1xf32, #tpu.memory_space<vmem>>) attributes {dimension_semantics = [#tpu.dimension_semantics<parallel>, #tpu.dimension_semantics<arbitrary>], iteration_bounds = array<i64: 2, 2>, scalar_prefetch = 0 : i64, scratch_operands = 3 : i64, tpu.core_type = #tpu.core_type<tc>, window_params = [{transform_indices = @transform_0, window_bounds = array<i64: 1, 16, 128>}, {transform_indices = @transform_1, window_bounds = array<i64: 1, 1, 16, 34>}, {pipeline_mode = #tpu.pipeline_mode<synchronous>, transform_indices = @transform_2, window_bounds = array<i64: 16, 1>}, {pipeline_mode = #tpu.pipeline_mode<synchronous>, transform_indices = @transform_3, window_bounds = array<i64: 16, 1>}, {pipeline_mode = #tpu.pipeline_mode<synchronous>, transform_indices = @transform_4, window_bounds = array<i64: 48, 16>}, {pipeline_mode = #tpu.pipeline_mode<synchronous>, transform_indices = @transform_5, window_bounds = array<i64: 48, 9>}, {pipeline_mode = #tpu.pipeline_mode<synchronous>, transform_indices = @transform_6, window_bounds = array<i64: 16, 1>}, {pipeline_mode = #tpu.pipeline_mode<synchronous>, transform_indices = @transform_7, window_bounds = array<i64: 16, 16>}, {transform_indices = @transform_8, window_bounds = array<i64: 1, 16, 128>}, {transform_indices = @transform_9, window_bounds = array<i64: 1, 16, 16>}]} {
    %c0 = arith.constant 0 : index
    %c0_0 = arith.constant 0 : index
    %c0_1 = arith.constant 0 : index
    %c0_2 = arith.constant 0 : index
    %0 = vector.load %arg3[%c0, %c0_0, %c0_1, %c0_2] : memref<1x1x16x34xf32, #tpu.memory_space<vmem>>, vector<1x1x16x17xf32>
    %1 = vector.shape_cast %0 : vector<1x1x16x17xf32> to vector<16x17xf32>
    %c0_3 = arith.constant 0 : index
    %c0_4 = arith.constant 0 : index
    %c0_5 = arith.constant 0 : index
    %2 = vector.load %arg2[%c0_3, %c0_4, %c0_5] : memref<1x16x128xf32, #tpu.memory_space<vmem>>, vector<1x16x128xf32>
    %3 = vector.shape_cast %2 : vector<1x16x128xf32> to vector<16x128xf32>
    %c0_6 = arith.constant 0 : index
    %c0_7 = arith.constant 0 : index
    %c0_8 = arith.constant 0 : index
    %c17 = arith.constant 17 : index
    %4 = vector.load %arg3[%c0_6, %c0_7, %c0_8, %c17] : memref<1x1x16x34xf32, #tpu.memory_space<vmem>>, vector<1x1x16x17xf32>
    %5 = vector.shape_cast %4 : vector<1x1x16x17xf32> to vector<16x17xf32>
    %6 = tpu.concatenate %1, %3, %5 in 1 : vector<16x17xf32>, vector<16x128xf32>, vector<16x17xf32> -> vector<16x162xf32>
    %c0_9 = arith.constant 0 : index
    %c0_10 = arith.constant 0 : index
    %7 = vector.load %arg4[%c0_9, %c0_10] : memref<16x1xf32, #tpu.memory_space<vmem>>, vector<16x1xf32>
    %c0_11 = arith.constant 0 : index
    %c0_12 = arith.constant 0 : index
    %8 = vector.load %arg5[%c0_11, %c0_12] : memref<16x1xf32, #tpu.memory_space<vmem>>, vector<16x1xf32>
    %cst = arith.constant dense<0.000000e+00> : vector<162xf32>
    %9 = vector.multi_reduction <add>, %6, %cst [0] : vector<16x162xf32> to vector<162xf32>
    %10 = vector.shape_cast %9 : vector<162xf32> to vector<1x162xf32>
    %cst_13 = arith.constant 1.600000e+01 : f32
    %11 = vector.broadcast %cst_13 : f32 to vector<1x162xf32>
    %12 = arith.divf %10, %11 : vector<1x162xf32>
    %13 = vector.broadcast %12 : vector<1x162xf32> to vector<16x162xf32>
    %14 = arith.subf %6, %13 : vector<16x162xf32>
    %15 = arith.mulf %14, %14 : vector<16x162xf32>
    %cst_14 = arith.constant dense<0.000000e+00> : vector<162xf32>
    %16 = vector.multi_reduction <add>, %15, %cst_14 [0] : vector<16x162xf32> to vector<162xf32>
    %17 = vector.shape_cast %16 : vector<162xf32> to vector<1x162xf32>
    %cst_15 = arith.constant 1.600000e+01 : f32
    %18 = vector.broadcast %cst_15 : f32 to vector<1x162xf32>
    %19 = arith.divf %17, %18 : vector<1x162xf32>
    %cst_16 = arith.constant 9.99999974E-6 : f32
    %20 = vector.broadcast %cst_16 : f32 to vector<1x162xf32>
    %21 = arith.addf %19, %20 : vector<1x162xf32>
    %22 = math.rsqrt %21 : vector<1x162xf32>
    %23 = vector.broadcast %22 : vector<1x162xf32> to vector<16x162xf32>
    %24 = arith.mulf %14, %23 : vector<16x162xf32>
    %25 = vector.broadcast %7 : vector<16x1xf32> to vector<16x162xf32>
    %26 = arith.mulf %24, %25 : vector<16x162xf32>
    %27 = vector.broadcast %8 : vector<16x1xf32> to vector<16x162xf32>
    %28 = arith.addf %26, %27 : vector<16x162xf32>
    %c0_17 = arith.constant 0 : index
    %c0_18 = arith.constant 0 : index
    %29 = vector.load %arg6[%c0_17, %c0_18] : memref<48x16xbf16, #tpu.memory_space<vmem>>, vector<48x16xbf16>
    %30 = arith.truncf %28 : vector<16x162xf32> to vector<16x162xbf16>
    %cst_19 = arith.constant dense<0.000000e+00> : vector<48x162xf32>
    %31 = tpu.matmul %29, %30, %cst_19 {dimension_numbers = #tpu.dot_dimension_numbers<[1], [0], [0], [1], [0, 0, 1, 1], [], []>} : vector<48x16xbf16>, vector<16x162xbf16>, vector<48x162xf32> -> vector<48x162xf32>
    %c0_20 = arith.constant 0 : index
    %c0_21 = arith.constant 0 : index
    %32 = vector.load %arg7[%c0_20, %c0_21] : memref<48x9xf32, #tpu.memory_space<vmem>>, vector<48x9xf32>
    %c0_i32 = arith.constant 0 : i32
    %33 = arith.cmpi eq, %arg1, %c0_i32 : i32
    %c1_i32 = arith.constant 1 : i32
    %34 = arith.cmpi eq, %arg1, %c1_i32 : i32
    %35 = tpu.iota {dimensions = array<i32: 1>} : vector<1x162xi32>
    %c1_i32_22 = arith.constant 1 : i32
    %36 = vector.broadcast %c1_i32_22 : i32 to vector<1x162xi32>
    %37 = arith.subi %35, %36 : vector<1x162xi32>
    %c16_i32 = arith.constant 16 : i32
    %c0_i32_23 = arith.constant 0 : i32
    %38 = arith.cmpi eq, %c16_i32, %c0_i32_23 : i32
    %c1_i32_24 = arith.constant 1 : i32
    %39 = arith.select %38, %c1_i32_24, %c16_i32 : i32
    %40 = vector.broadcast %39 : i32 to vector<1x162xi32>
    %41 = arith.remsi %37, %40 : vector<1x162xi32>
    %c0_i32_25 = arith.constant 0 : i32
    %42 = vector.broadcast %c0_i32_25 : i32 to vector<1x162xi32>
    %43 = arith.cmpi ne, %41, %42 : vector<1x162xi32>
    %c0_i32_26 = arith.constant 0 : i32
    %44 = vector.broadcast %c0_i32_26 : i32 to vector<1x162xi32>
    %45 = arith.cmpi slt, %41, %44 : vector<1x162xi32>
    %c0_i32_27 = arith.constant 0 : i32
    %46 = arith.cmpi slt, %39, %c0_i32_27 : i32
    %47 = vector.broadcast %46 : i1 to vector<1x162xi1>
    %48 = vector.broadcast %47 : vector<1x162xi1> to vector<1x162xi1>
    %49 = arith.xori %45, %48 : vector<1x162xi1>
    %50 = arith.andi %49, %43 : vector<1x162xi1>
    %51 = vector.broadcast %39 : i32 to vector<1x162xi32>
    %52 = arith.addi %41, %51 : vector<1x162xi32>
    %53 = arith.select %50, %52, %41 : vector<1x162xi1>, vector<1x162xi32>
    %cst_28 = arith.constant 0.000000e+00 : f32
    %cst_29 = arith.constant 1.000000e+00 : f32
    %54 = arith.select %33, %cst_28, %cst_29 : f32
    %cst_30 = arith.constant 0.000000e+00 : f32
    %cst_31 = arith.constant 1.000000e+00 : f32
    %55 = arith.select %34, %cst_30, %cst_31 : f32
    %c1_i32_32 = arith.constant 1 : i32
    %56 = vector.broadcast %c1_i32_32 : i32 to vector<1x162xi32>
    %57 = arith.cmpi sge, %35, %56 : vector<1x162xi32>
    %c17_i32 = arith.constant 17 : i32
    %58 = vector.broadcast %c17_i32 : i32 to vector<1x162xi32>
    %59 = arith.cmpi slt, %35, %58 : vector<1x162xi32>
    %60 = arith.andi %57, %59 : vector<1x162xi1>
    %cst_33 = arith.constant 1.000000e+00 : f32
    %61 = vector.broadcast %54 : f32 to vector<1x162xf32>
    %62 = vector.broadcast %cst_33 : f32 to vector<1x162xf32>
    %63 = arith.select %60, %61, %62 : vector<1x162xi1>, vector<1x162xf32>
    %c145_i32 = arith.constant 145 : i32
    %64 = vector.broadcast %c145_i32 : i32 to vector<1x162xi32>
    %65 = arith.cmpi sge, %35, %64 : vector<1x162xi32>
    %c161_i32 = arith.constant 161 : i32
    %66 = vector.broadcast %c161_i32 : i32 to vector<1x162xi32>
    %67 = arith.cmpi slt, %35, %66 : vector<1x162xi32>
    %68 = arith.andi %65, %67 : vector<1x162xi1>
    %cst_34 = arith.constant 1.000000e+00 : f32
    %69 = vector.broadcast %55 : f32 to vector<1x162xf32>
    %70 = vector.broadcast %cst_34 : f32 to vector<1x162xf32>
    %71 = arith.select %68, %69, %70 : vector<1x162xi1>, vector<1x162xf32>
    %72 = arith.mulf %63, %71 : vector<1x162xf32>
    %73 = vector.broadcast %72 : vector<1x162xf32> to vector<48x162xf32>
    %74 = arith.mulf %31, %73 : vector<48x162xf32>
    %c15_i32 = arith.constant 15 : i32
    %75 = vector.broadcast %c15_i32 : i32 to vector<1x162xi32>
    %76 = arith.cmpi ne, %53, %75 : vector<1x162xi32>
    %77 = arith.extui %76 : vector<1x162xi1> to vector<1x162xi32>
    %78 = arith.sitofp %77 : vector<1x162xi32> to vector<1x162xf32>
    %79 = vector.broadcast %78 : vector<1x162xf32> to vector<48x162xf32>
    %80 = arith.mulf %74, %79 : vector<48x162xf32>
    %c0_i32_35 = arith.constant 0 : i32
    %81 = vector.broadcast %c0_i32_35 : i32 to vector<1x162xi32>
    %82 = arith.cmpi ne, %53, %81 : vector<1x162xi32>
    %83 = arith.extui %82 : vector<1x162xi1> to vector<1x162xi32>
    %84 = arith.sitofp %83 : vector<1x162xi32> to vector<1x162xf32>
    %85 = vector.broadcast %84 : vector<1x162xf32> to vector<48x162xf32>
    %86 = arith.mulf %74, %85 : vector<48x162xf32>
    %87 = vector.extract_strided_slice %32 {offsets = [0, 0], sizes = [48, 1], strides = [1, 1]} : vector<48x9xf32> to vector<48x1xf32>
    %88 = vector.extract_strided_slice %80 {offsets = [0, 0], sizes = [48, 128], strides = [1, 1]} : vector<48x162xf32> to vector<48x128xf32>
    %89 = vector.broadcast %87 : vector<48x1xf32> to vector<48x128xf32>
    %90 = arith.mulf %89, %88 : vector<48x128xf32>
    %91 = vector.extract_strided_slice %32 {offsets = [0, 1], sizes = [48, 1], strides = [1, 1]} : vector<48x9xf32> to vector<48x1xf32>
    %92 = vector.extract_strided_slice %74 {offsets = [0, 1], sizes = [48, 128], strides = [1, 1]} : vector<48x162xf32> to vector<48x128xf32>
    %93 = vector.broadcast %91 : vector<48x1xf32> to vector<48x128xf32>
    %94 = arith.mulf %93, %92 : vector<48x128xf32>
    %95 = arith.addf %90, %94 : vector<48x128xf32>
    %96 = vector.extract_strided_slice %32 {offsets = [0, 2], sizes = [48, 1], strides = [1, 1]} : vector<48x9xf32> to vector<48x1xf32>
    %97 = vector.extract_strided_slice %86 {offsets = [0, 2], sizes = [48, 128], strides = [1, 1]} : vector<48x162xf32> to vector<48x128xf32>
    %98 = vector.broadcast %96 : vector<48x1xf32> to vector<48x128xf32>
    %99 = arith.mulf %98, %97 : vector<48x128xf32>
    %100 = arith.addf %95, %99 : vector<48x128xf32>
    %101 = vector.extract_strided_slice %32 {offsets = [0, 3], sizes = [48, 1], strides = [1, 1]} : vector<48x9xf32> to vector<48x1xf32>
    %102 = vector.extract_strided_slice %80 {offsets = [0, 16], sizes = [48, 128], strides = [1, 1]} : vector<48x162xf32> to vector<48x128xf32>
    %103 = vector.broadcast %101 : vector<48x1xf32> to vector<48x128xf32>
    %104 = arith.mulf %103, %102 : vector<48x128xf32>
    %105 = arith.addf %100, %104 : vector<48x128xf32>
    %106 = vector.extract_strided_slice %32 {offsets = [0, 4], sizes = [48, 1], strides = [1, 1]} : vector<48x9xf32> to vector<48x1xf32>
    %107 = vector.extract_strided_slice %74 {offsets = [0, 17], sizes = [48, 128], strides = [1, 1]} : vector<48x162xf32> to vector<48x128xf32>
    %108 = vector.broadcast %106 : vector<48x1xf32> to vector<48x128xf32>
    %109 = arith.mulf %108, %107 : vector<48x128xf32>
    %110 = arith.addf %105, %109 : vector<48x128xf32>
    %111 = vector.extract_strided_slice %32 {offsets = [0, 5], sizes = [48, 1], strides = [1, 1]} : vector<48x9xf32> to vector<48x1xf32>
    %112 = vector.extract_strided_slice %86 {offsets = [0, 18], sizes = [48, 128], strides = [1, 1]} : vector<48x162xf32> to vector<48x128xf32>
    %113 = vector.broadcast %111 : vector<48x1xf32> to vector<48x128xf32>
    %114 = arith.mulf %113, %112 : vector<48x128xf32>
    %115 = arith.addf %110, %114 : vector<48x128xf32>
    %116 = vector.extract_strided_slice %32 {offsets = [0, 6], sizes = [48, 1], strides = [1, 1]} : vector<48x9xf32> to vector<48x1xf32>
    %117 = vector.extract_strided_slice %80 {offsets = [0, 32], sizes = [48, 128], strides = [1, 1]} : vector<48x162xf32> to vector<48x128xf32>
    %118 = vector.broadcast %116 : vector<48x1xf32> to vector<48x128xf32>
    %119 = arith.mulf %118, %117 : vector<48x128xf32>
    %120 = arith.addf %115, %119 : vector<48x128xf32>
    %121 = vector.extract_strided_slice %32 {offsets = [0, 7], sizes = [48, 1], strides = [1, 1]} : vector<48x9xf32> to vector<48x1xf32>
    %122 = vector.extract_strided_slice %74 {offsets = [0, 33], sizes = [48, 128], strides = [1, 1]} : vector<48x162xf32> to vector<48x128xf32>
    %123 = vector.broadcast %121 : vector<48x1xf32> to vector<48x128xf32>
    %124 = arith.mulf %123, %122 : vector<48x128xf32>
    %125 = arith.addf %120, %124 : vector<48x128xf32>
    %126 = vector.extract_strided_slice %32 {offsets = [0, 8], sizes = [48, 1], strides = [1, 1]} : vector<48x9xf32> to vector<48x1xf32>
    %127 = vector.extract_strided_slice %86 {offsets = [0, 34], sizes = [48, 128], strides = [1, 1]} : vector<48x162xf32> to vector<48x128xf32>
    %128 = vector.broadcast %126 : vector<48x1xf32> to vector<48x128xf32>
    %129 = arith.mulf %128, %127 : vector<48x128xf32>
    %130 = arith.addf %125, %129 : vector<48x128xf32>
    %131 = vector.extract_strided_slice %130 {offsets = [0, 0], sizes = [16, 128], strides = [1, 1]} : vector<48x128xf32> to vector<16x128xf32>
    %132 = vector.extract_strided_slice %130 {offsets = [16, 0], sizes = [16, 128], strides = [1, 1]} : vector<48x128xf32> to vector<16x128xf32>
    %133 = vector.extract_strided_slice %130 {offsets = [32, 0], sizes = [16, 128], strides = [1, 1]} : vector<48x128xf32> to vector<16x128xf32>
    %134 = arith.truncf %133 : vector<16x128xf32> to vector<16x128xbf16>
    %c0_36 = arith.constant 0 : index
    %c0_37 = arith.constant 0 : index
    %c0_38 = arith.constant 0 : index
    %135 = vector.load %arg10[%c0_36, %c0_37, %c0_38] : memref<1x16x128xbf16, #tpu.memory_space<vmem>>, vector<1x16x128xbf16>
    %136 = vector.shape_cast %135 : vector<1x16x128xbf16> to vector<16x128xbf16>
    %137 = vector.shape_cast %134 : vector<16x128xbf16> to vector<1x16x128xbf16>
    tpu.vector_store %arg10[%c0_36, %c0_37, %c0_38], %137 {strides = array<i32>} : memref<1x16x128xbf16, #tpu.memory_space<vmem>>, vector<1x16x128xbf16>,
    %c0_i32_39 = arith.constant 0 : i32
    %138 = arith.cmpi eq, %arg1, %c0_i32_39 : i32
    %139 = arith.extui %138 : i1 to i32
    %c0_i32_40 = arith.constant 0 : i32
    %140 = arith.cmpi ne, %139, %c0_i32_40 : i32
    scf.if %140 {
      %cst_58 = arith.constant 0.000000e+00 : f32
      %162 = vector.broadcast %cst_58 : f32 to vector<16x16xf32>
      %c0_59 = arith.constant 0 : index
      %c0_60 = arith.constant 0 : index
      %163 = vector.load %arg12[%c0_59, %c0_60] : memref<16x16xf32, #tpu.memory_space<vmem>>, vector<16x16xf32>
      tpu.vector_store %arg12[%c0_59, %c0_60], %162 {strides = array<i32>} : memref<16x16xf32, #tpu.memory_space<vmem>>, vector<16x16xf32>,
      %cst_61 = arith.constant 0.000000e+00 : f32
      %164 = vector.broadcast %cst_61 : f32 to vector<16x1xf32>
      %c0_62 = arith.constant 0 : index
      %c0_63 = arith.constant 0 : index
      %165 = vector.load %arg13[%c0_62, %c0_63] : memref<16x1xf32, #tpu.memory_space<vmem>>, vector<16x1xf32>
      tpu.vector_store %arg13[%c0_62, %c0_63], %164 {strides = array<i32>} : memref<16x1xf32, #tpu.memory_space<vmem>>, vector<16x1xf32>,
      %cst_64 = arith.constant 0.000000e+00 : f32
      %166 = vector.broadcast %cst_64 : f32 to vector<16x1xf32>
      %c0_65 = arith.constant 0 : index
      %c0_66 = arith.constant 0 : index
      %167 = vector.load %arg14[%c0_65, %c0_66] : memref<16x1xf32, #tpu.memory_space<vmem>>, vector<16x1xf32>
      tpu.vector_store %arg14[%c0_65, %c0_66], %166 {strides = array<i32>} : memref<16x1xf32, #tpu.memory_space<vmem>>, vector<16x1xf32>,
    } else {
    }
    %c0_41 = arith.constant 0 : index
    %c0_42 = arith.constant 0 : index
    %141 = vector.load %arg13[%c0_41, %c0_42] : memref<16x1xf32, #tpu.memory_space<vmem>>, vector<16x1xf32>
    %142 = arith.mulf %131, %131 : vector<16x128xf32>
    %cst_43 = arith.constant dense<0.000000e+00> : vector<16xf32>
    %143 = vector.multi_reduction <add>, %142, %cst_43 [1] : vector<16x128xf32> to vector<16xf32>
    %144 = vector.shape_cast %143 : vector<16xf32> to vector<16x1xf32>
    %145 = arith.addf %141, %144 : vector<16x1xf32>
    %c0_44 = arith.constant 0 : index
    %c0_45 = arith.constant 0 : index
    %146 = vector.load %arg13[%c0_44, %c0_45] : memref<16x1xf32, #tpu.memory_space<vmem>>, vector<16x1xf32>
    tpu.vector_store %arg13[%c0_44, %c0_45], %145 {strides = array<i32>} : memref<16x1xf32, #tpu.memory_space<vmem>>, vector<16x1xf32>,
    %c0_46 = arith.constant 0 : index
    %c0_47 = arith.constant 0 : index
    %147 = vector.load %arg14[%c0_46, %c0_47] : memref<16x1xf32, #tpu.memory_space<vmem>>, vector<16x1xf32>
    %148 = arith.mulf %132, %132 : vector<16x128xf32>
    %cst_48 = arith.constant dense<0.000000e+00> : vector<16xf32>
    %149 = vector.multi_reduction <add>, %148, %cst_48 [1] : vector<16x128xf32> to vector<16xf32>
    %150 = vector.shape_cast %149 : vector<16xf32> to vector<16x1xf32>
    %151 = arith.addf %147, %150 : vector<16x1xf32>
    %c0_49 = arith.constant 0 : index
    %c0_50 = arith.constant 0 : index
    %152 = vector.load %arg14[%c0_49, %c0_50] : memref<16x1xf32, #tpu.memory_space<vmem>>, vector<16x1xf32>
    tpu.vector_store %arg14[%c0_49, %c0_50], %151 {strides = array<i32>} : memref<16x1xf32, #tpu.memory_space<vmem>>, vector<16x1xf32>,
    %c0_51 = arith.constant 0 : index
    %c0_52 = arith.constant 0 : index
    %153 = vector.load %arg12[%c0_51, %c0_52] : memref<16x16xf32, #tpu.memory_space<vmem>>, vector<16x16xf32>
    %154 = arith.truncf %131 : vector<16x128xf32> to vector<16x128xbf16>
    %155 = arith.truncf %132 : vector<16x128xf32> to vector<16x128xbf16>
    %cst_53 = arith.constant dense<0.000000e+00> : vector<16x16xf32>
    %156 = tpu.matmul %154, %155, %cst_53 {dimension_numbers = #tpu.dot_dimension_numbers<[1], [1], [0], [0], [0, 0, 1, 0], [], []>} : vector<16x128xbf16>, vector<16x128xbf16>, vector<16x16xf32> -> vector<16x16xf32>
    %157 = arith.addf %153, %156 : vector<16x16xf32>
    %c0_54 = arith.constant 0 : index
    %c0_55 = arith.constant 0 : index
    %158 = vector.load %arg12[%c0_54, %c0_55] : memref<16x16xf32, #tpu.memory_space<vmem>>, vector<16x16xf32>
    tpu.vector_store %arg12[%c0_54, %c0_55], %157 {strides = array<i32>} : memref<16x16xf32, #tpu.memory_space<vmem>>, vector<16x16xf32>,
    %c1_i32_56 = arith.constant 1 : i32
    %159 = arith.cmpi eq, %arg1, %c1_i32_56 : i32
    %160 = arith.extui %159 : i1 to i32
    %c0_i32_57 = arith.constant 0 : i32
    %161 = arith.cmpi ne, %160, %c0_i32_57 : i32
    scf.if %161 {
      %c0_58 = arith.constant 0 : index
      %c0_59 = arith.constant 0 : index
      %162 = vector.load %arg13[%c0_58, %c0_59] : memref<16x1xf32, #tpu.memory_space<vmem>>, vector<16x1xf32>
      %cst_60 = arith.constant 1.000000e-24 : f32
      %163 = vector.broadcast %cst_60 : f32 to vector<16x1xf32>
      %164 = arith.maximumf %162, %163 : vector<16x1xf32>
      %165 = math.rsqrt %164 : vector<16x1xf32>
      %c0_61 = arith.constant 0 : index
      %c0_62 = arith.constant 0 : index
      %166 = vector.load %arg14[%c0_61, %c0_62] : memref<16x1xf32, #tpu.memory_space<vmem>>, vector<16x1xf32>
      %cst_63 = arith.constant 1.000000e-24 : f32
      %167 = vector.broadcast %cst_63 : f32 to vector<16x1xf32>
      %168 = arith.maximumf %166, %167 : vector<16x1xf32>
      %169 = math.rsqrt %168 : vector<16x1xf32>
      %c0_64 = arith.constant 0 : index
      %c0_65 = arith.constant 0 : index
      %170 = vector.load %arg12[%c0_64, %c0_65] : memref<16x16xf32, #tpu.memory_space<vmem>>, vector<16x16xf32>
      %171 = vector.broadcast %165 : vector<16x1xf32> to vector<16x16xf32>
      %172 = arith.mulf %170, %171 : vector<16x16xf32>
      %173 = tpu.transpose %169, [1, 0] : vector<16x1xf32> -> vector<1x16xf32>
      %174 = vector.broadcast %173 : vector<1x16xf32> to vector<16x16xf32>
      %175 = arith.mulf %172, %174 : vector<16x16xf32>
      %c0_66 = arith.constant 0 : index
      %c0_67 = arith.constant 0 : index
      %176 = vector.load %arg8[%c0_66, %c0_67] : memref<16x1xf32, #tpu.memory_space<vmem>>, vector<16x1xf32>
      %177 = vector.broadcast %176 : vector<16x1xf32> to vector<16x16xf32>
      %178 = arith.mulf %175, %177 : vector<16x16xf32>
      %c0_68 = arith.constant 0 : index
      %c0_69 = arith.constant 0 : index
      %179 = vector.load %arg9[%c0_68, %c0_69] : memref<16x16xf32, #tpu.memory_space<vmem>>, vector<16x16xf32>
      %cst_70 = arith.constant 5.000000e-01 : f32
      %180 = vector.broadcast %cst_70 : f32 to vector<16x16xf32>
      %181 = arith.cmpf ogt, %179, %180 : vector<16x16xf32>
      %cst_71 = arith.constant -1.000000e+30 : f32
      %182 = vector.broadcast %cst_71 : f32 to vector<16x16xf32>
      %183 = arith.select %181, %178, %182 : vector<16x16xi1>, vector<16x16xf32>
      %cst_72 = arith.constant dense<0xFF800000> : vector<16xf32>
      %184 = vector.multi_reduction <maximumf>, %183, %cst_72 [1] : vector<16x16xf32> to vector<16xf32>
      %185 = vector.shape_cast %184 : vector<16xf32> to vector<16x1xf32>
      %186 = vector.broadcast %185 : vector<16x1xf32> to vector<16x16xf32>
      %187 = arith.subf %183, %186 : vector<16x16xf32>
      %188 = math.exp %187 : vector<16x16xf32>
      %cst_73 = arith.constant dense<0.000000e+00> : vector<16xf32>
      %189 = vector.multi_reduction <add>, %188, %cst_73 [1] : vector<16x16xf32> to vector<16xf32>
      %190 = vector.shape_cast %189 : vector<16xf32> to vector<16x1xf32>
      %191 = vector.broadcast %190 : vector<16x1xf32> to vector<16x16xf32>
      %192 = arith.divf %188, %191 : vector<16x16xf32>
      %c0_74 = arith.constant 0 : index
      %c0_75 = arith.constant 0 : index
      %c0_76 = arith.constant 0 : index
      %193 = vector.load %arg11[%c0_74, %c0_75, %c0_76] : memref<1x16x16xf32, #tpu.memory_space<vmem>>, vector<1x16x16xf32>
      %194 = vector.shape_cast %193 : vector<1x16x16xf32> to vector<16x16xf32>
      %195 = vector.shape_cast %192 : vector<16x16xf32> to vector<1x16x16xf32>
      tpu.vector_store %arg11[%c0_74, %c0_75, %c0_76], %195 {strides = array<i32>} : memref<1x16x16xf32, #tpu.memory_space<vmem>>, vector<1x16x16xf32>,
    } else {
    }
    return
  }
  func.func @transform_0(%arg0: i32, %arg1: i32) -> (i32, i32, i32) {
    %c0_i32 = arith.constant 0 : i32
    %c0_i32_0 = arith.constant 0 : i32
    return %arg0, %c0_i32, %arg1 : i32, i32, i32
  }
  func.func @transform_1(%arg0: i32, %arg1: i32) -> (i32, i32, i32, i32) {
    %c0_i32 = arith.constant 0 : i32
    %c0_i32_0 = arith.constant 0 : i32
    %c0_i32_1 = arith.constant 0 : i32
    return %arg0, %arg1, %c0_i32, %c0_i32_0 : i32, i32, i32, i32
  }
  func.func @transform_2(%arg0: i32, %arg1: i32) -> (i32, i32) {
    %c0_i32 = arith.constant 0 : i32
    %c0_i32_0 = arith.constant 0 : i32
    %c0_i32_1 = arith.constant 0 : i32
    return %c0_i32, %c0_i32_0 : i32, i32
  }
  func.func @transform_3(%arg0: i32, %arg1: i32) -> (i32, i32) {
    %c0_i32 = arith.constant 0 : i32
    %c0_i32_0 = arith.constant 0 : i32
    %c0_i32_1 = arith.constant 0 : i32
    return %c0_i32, %c0_i32_0 : i32, i32
  }
  func.func @transform_4(%arg0: i32, %arg1: i32) -> (i32, i32) {
    %c0_i32 = arith.constant 0 : i32
    %c0_i32_0 = arith.constant 0 : i32
    %c0_i32_1 = arith.constant 0 : i32
    return %c0_i32, %c0_i32_0 : i32, i32
  }
  func.func @transform_5(%arg0: i32, %arg1: i32) -> (i32, i32) {
    %c0_i32 = arith.constant 0 : i32
    %c0_i32_0 = arith.constant 0 : i32
    %c0_i32_1 = arith.constant 0 : i32
    return %c0_i32, %c0_i32_0 : i32, i32
  }
  func.func @transform_6(%arg0: i32, %arg1: i32) -> (i32, i32) {
    %c0_i32 = arith.constant 0 : i32
    %c0_i32_0 = arith.constant 0 : i32
    %c0_i32_1 = arith.constant 0 : i32
    return %c0_i32, %c0_i32_0 : i32, i32
  }
  func.func @transform_7(%arg0: i32, %arg1: i32) -> (i32, i32) {
    %c0_i32 = arith.constant 0 : i32
    %c0_i32_0 = arith.constant 0 : i32
    %c0_i32_1 = arith.constant 0 : i32
    return %c0_i32, %c0_i32_0 : i32, i32
  }
  func.func @transform_8(%arg0: i32, %arg1: i32) -> (i32, i32, i32) {
    %c0_i32 = arith.constant 0 : i32
    %c0_i32_0 = arith.constant 0 : i32
    return %arg0, %c0_i32, %arg1 : i32, i32, i32
  }
  func.func @transform_9(%arg0: i32, %arg1: i32) -> (i32, i32, i32) {
    %c0_i32 = arith.constant 0 : i32
    %c0_i32_0 = arith.constant 0 : i32
    %c0_i32_1 = arith.constant 0 : i32
    return %arg0, %c0_i32, %c0_i32_0 : i32, i32, i32
  }
}

</mosaic_0001>

<llo_original>
// kernel: tpu_custom_call.1
$region0: #{tpu_custom_call.1}
  #allocation0 [shape = 'u32[]', space=smem, size = 0x4, offset = 0x4, fixed_abs, tag = 'smem constant byte address 0x4 - core index']
  #allocation1 [shape = 'u32[144,128]{1,0:T(1,128)}', space=vmem, size = 0x12000, scoped, tag = 'internal scratch']
  #allocation2 [shape = 'f32[16,16]{1,0:T(8,128)}', space=vmem, size = 0x2000, scoped, tag = 'scratch operand']
  #allocation3 [shape = 'f32[16,1]{1,0:T(8,128)}', space=vmem, size = 0x2000, scoped, tag = 'scratch operand']
  #allocation4 [shape = 'f32[16,1]{1,0:T(8,128)}', space=vmem, size = 0x2000, scoped, tag = 'scratch operand']
  %s0 = inlined_call_operand.hbm [shape: f32[2,16,256], index: 0, kind: input, shape index: {}]
  %s1 = inlined_call_operand.hbm [shape: f32[2,2,16,34], index: 1, kind: input, shape index: {}]
  %s2 = inlined_call_operand.hbm [shape: f32[16,1], index: 2, kind: input, shape index: {}]
  %s3 = inlined_call_operand.hbm [shape: f32[16,1], index: 3, kind: input, shape index: {}]
  %s4 = inlined_call_operand.hbm [shape: bf16[48,16], index: 4, kind: input, shape index: {}]
  %s5 = inlined_call_operand.hbm [shape: f32[48,9], index: 5, kind: input, shape index: {}]
  %s6 = inlined_call_operand.hbm [shape: f32[16,1], index: 6, kind: input, shape index: {}]
  %s7 = inlined_call_operand.hbm [shape: f32[16,16], index: 7, kind: input, shape index: {}]
  %s8 = inlined_call_operand.hbm [shape: bf16[2,16,256], index: 8, kind: output, shape index: {0}]
  %s9 = inlined_call_operand.hbm [shape: f32[2,16,16], index: 9, kind: output, shape index: {1}]
  %10 = xla_tuple %s8, %s9
  %s11 = sld [smem:[#allocation0]]
  $region113: #{tpu_custom_call.1} parent=0
    _
  %s13 = ssub.s32 1, %s11
  %s14 = scalar_select 0, %s13, %s11
  $region1: #{tpu_custom_call.1} parent=0
    #allocation5 [shape = 'u8[16384]{0}', space=vmem, size = 0x4000, scoped, tag = 'input window, operand 0']
    #allocation6 [shape = 's32[2]{0}', space=sflag, size = 0x8, scoped, tag = 'scoped memory for tpu_custom_call.1']
    #allocation7 [shape = 's32[2]{0}', space=sflag, size = 0x8, scoped, tag = 'scoped memory for tpu_custom_call.1']
    #allocation8 [shape = 'u8[16384]{0}', space=vmem, size = 0x4000, scoped, tag = 'input window, operand 1']
    #allocation9 [shape = 's32[2]{0}', space=sflag, size = 0x8, scoped, tag = 'scoped memory for tpu_custom_call.1']
    #allocation10 [shape = 'u8[8192]{0}', space=vmem, size = 0x2000, scoped, tag = 'input window, operand 2, single buffered']
    #allocation11 [shape = 'u8[8192]{0}', space=vmem, size = 0x2000, scoped, tag = 'input window, operand 3, single buffered']
    #allocation12 [shape = 's32[1]{0}', space=sflag, size = 0x4, scoped, tag = 'scoped memory for tpu_custom_call.1']
    #allocation13 [shape = 'u8[12288]{0}', space=vmem, size = 0x3000, scoped, tag = 'input window, operand 4, single buffered']
    #allocation14 [shape = 'u8[24576]{0}', space=vmem, size = 0x6000, scoped, tag = 'input window, operand 5, single buffered']
    #allocation15 [shape = 's32[1]{0}', space=sflag, size = 0x4, scoped, tag = 'scoped memory for tpu_custom_call.1']
    #allocation16 [shape = 'u8[8192]{0}', space=vmem, size = 0x2000, scoped, tag = 'input window, operand 6, single buffered']
    #allocation17 [shape = 'u8[8192]{0}', space=vmem, size = 0x2000, scoped, tag = 'input window, operand 7, single buffered']
    #allocation18 [shape = 's32[1]{0}', space=sflag, size = 0x4, scoped, tag = 'scoped memory for tpu_custom_call.1']
    #allocation19 [shape = 'u8[8192]{0}', space=vmem, size = 0x2000, scoped, tag = 'output window, operand 0']
    #allocation20 [shape = 'u8[16384]{0}', space=vmem, size = 0x4000, scoped, tag = 'output window, operand 1']
    #allocation21 [shape = 's32[2]{0}', space=sflag, size = 0x8, scoped, tag = 'scoped memory for tpu_custom_call.1']
    %15 = vsyncpa [#allocation6], 0
    %s16 = scalar_lea.sflag [#allocation6], 1
    %17 = vsyncpa %s16, 0
    %18 = vsyncpa [#allocation9], 0
    %s19 = scalar_lea.sflag [#allocation9], 1
    %20 = vsyncpa %s19, 0
    %21 = vsyncpa [#allocation12], 0
    %22 = vsyncpa [#allocation15], 0
    %23 = vsyncpa [#allocation18], 0
    %24 = vsyncpa [#allocation7], 0
    %s25 = scalar_lea.sflag [#allocation7], 1
    %26 = vsyncpa %s25, 0
    %27 = vsyncpa [#allocation21], 0
    %s28 = scalar_lea.sflag [#allocation21], 1
    %29 = vsyncpa %s28, 0
    loop: start=0, step=1, limit=6
    $region2: #{tpu_custom_call.1} parent=1 // loop_pre_header
      _
    $region3: #{tpu_custom_call.1} parent=1 // loop_header
      %s31 = sphi 0, %s35
      %p32 = scmp.ge.s32.totalorder %s31, 6
      %s38 = sphi 0, %s50
      %s39 = sphi 0, %s46
      %s40 = sphi 0, %s38
      %s41 = sphi 0, %s39
      %s42 = sphi 0, %s40
      %s43 = sphi 0, %s41
      %s55 = sphi 0, %s57
      %s58 = sphi 0, %s55
      %s59 = sphi 0, %s58
      %s75 = sphi 0, %s59
      %s83 = sphi 0, %s85
      %s86 = sphi 0, %s83
      %s87 = sphi 0, %s86
      %s103 = sphi 0, %s87
      %s107 = sphi 0, %s107
      %s109 = sphi 0, %s107
      %s110 = sphi 0, %s109
      %s124 = sphi 0, %s110
      %s128 = sphi 0, %s128
      %s130 = sphi 0, %s128
      %s131 = sphi 0, %s130
      %s145 = sphi 0, %s131
      %s149 = sphi 0, %s149
      %s151 = sphi 0, %s149
      %s152 = sphi 0, %s151
      %s166 = sphi 0, %s152
      %s170 = sphi 0, %s170
      %s172 = sphi 0, %s170
      %s173 = sphi 0, %s172
      %s187 = sphi 0, %s173
      %s191 = sphi 0, %s191
      %s193 = sphi 0, %s191
      %s194 = sphi 0, %s193
      %s208 = sphi 0, %s194
      %s212 = sphi 0, %s212
      %s214 = sphi 0, %s212
      %s215 = sphi 0, %s214
      %s229 = sphi 0, %s215
      %s237 = sphi 0, %s239
      %s240 = sphi 0, %s237
      %s241 = sphi 0, %s240
      %s257 = sphi 0, %s241
      %s263 = sphi 0, %s265
      %s266 = sphi 0, %s263
      %s267 = sphi 0, %s266
      %s283 = sphi 0, %s267
    $region4: #{tpu_custom_call.1} parent=1 // loop_header_branch
      %34 = sbr.rel (%p32) target = $region8
    $region5: #{tpu_custom_call.1} parent=1 // loop_body
      %s36 = ssub.s32 %s31, 1
      %s37 = ssub.s32 %s31, 2
      %s44 = sadd.s32 1, %s39
      %p45 = scmp.ge.s32.totalorder %s44, 2
      %s46 = scalar_select %p45, 0, %s44
      %s47 = sadd.s32 1, %s38
      %s48 = scalar_select %p45, %s47, %s38
      %p49 = scmp.ge.s32.totalorder %s48, 2
      %s50 = scalar_select %p49, 0, %s48
      %s51 = ssub.s32 %s38, %s50
      %s52 = ssub.s32 %s39, %s46
      %s53 = sor.u32 %s51, %s52
      %p54 = scmp.eq.s32.totalorder %s53, 0
      %s56 = sadd.s32 %s55, 1
      %s57 = scalar_select %p54, %s55, %s56
      %p60 = pneg %p54
      %p61 = scmp.eq.s32.totalorder %s31, 3
      %p62 = por %p60, %p61
      %p63 = scmp.ne.s32.totalorder %s55, %s58
      %p64 = scmp.eq.s32.totalorder %s31, 0
      %p65 = por %p63, %p64
      %p66 = scmp.ne.s32.totalorder %s55, %s58
      %p67 = scmp.eq.s32.totalorder %s36, 3
      %p68 = por %p66, %p67
      %p69 = scmp.ne.s32.totalorder %s58, %s59
      %p70 = scmp.eq.s32.totalorder %s36, 0
      %p71 = por %p69, %p70
      %p72 = scmp.ne.s32.totalorder %s58, %s59
      %p73 = scmp.eq.s32.totalorder %s37, 3
      %p74 = por %p72, %p73
      %p76 = scmp.ne.s32.totalorder %s59, %s75
      %p77 = scmp.eq.s32.totalorder %s37, 0
      %p78 = por %p76, %p77
      %s79 = ssub.s32 %s38, %s50
      %s80 = ssub.s32 %s39, %s46
      %s81 = sor.u32 %s79, %s80
      %p82 = scmp.eq.s32.totalorder %s81, 0
      %s84 = sadd.s32 %s83, 1
      %s85 = scalar_select %p82, %s83, %s84
      %p88 = pneg %p82
      %p89 = scmp.eq.s32.totalorder %s31, 3
      %p90 = por %p88, %p89
      %p91 = scmp.ne.s32.totalorder %s83, %s86
      %p92 = scmp.eq.s32.totalorder %s31, 0
      %p93 = por %p91, %p92
      %p94 = scmp.ne.s32.totalorder %s83, %s86
      %p95 = scmp.eq.s32.totalorder %s36, 3
      %p96 = por %p94, %p95
      %p97 = scmp.ne.s32.totalorder %s86, %s87
      %p98 = scmp.eq.s32.totalorder %s36, 0
      %p99 = por %p97, %p98
      %p100 = scmp.ne.s32.totalorder %s86, %s87
      %p101 = scmp.eq.s32.totalorder %s37, 3
      %p102 = por %p100, %p101
      %p104 = scmp.ne.s32.totalorder %s87, %s103
      %p105 = scmp.eq.s32.totalorder %s37, 0
      %p106 = por %p104, %p105
      %s108 = sadd.s32 %s107, 1
      %p111 = scmp.eq.s32.totalorder %s31, 3
      %p112 = scmp.ne.s32.totalorder %s107, %s109
      %p113 = scmp.eq.s32.totalorder %s31, 0
      %p114 = por %p112, %p113
      %p115 = scmp.ne.s32.totalorder %s107, %s109
      %p116 = scmp.eq.s32.totalorder %s36, 3
      %p117 = por %p115, %p116
      %p118 = scmp.ne.s32.totalorder %s109, %s110
      %p119 = scmp.eq.s32.totalorder %s36, 0
      %p120 = por %p118, %p119
      %p121 = scmp.ne.s32.totalorder %s109, %s110
      %p122 = scmp.eq.s32.totalorder %s37, 3
      %p123 = por %p121, %p122
      %p125 = scmp.ne.s32.totalorder %s110, %s124
      %p126 = scmp.eq.s32.totalorder %s37, 0
      %p127 = por %p125, %p126
      %s129 = sadd.s32 %s128, 1
      %p132 = scmp.eq.s32.totalorder %s31, 3
      %p133 = scmp.ne.s32.totalorder %s128, %s130
      %p134 = scmp.eq.s32.totalorder %s31, 0
      %p135 = por %p133, %p134
      %p136 = scmp.ne.s32.totalorder %s128, %s130
      %p137 = scmp.eq.s32.totalorder %s36, 3
      %p138 = por %p136, %p137
      %p139 = scmp.ne.s32.totalorder %s130, %s131
      %p140 = scmp.eq.s32.totalorder %s36, 0
      %p141 = por %p139, %p140
      %p142 = scmp.ne.s32.totalorder %s130, %s131
      %p143 = scmp.eq.s32.totalorder %s37, 3
      %p144 = por %p142, %p143
      %p146 = scmp.ne.s32.totalorder %s131, %s145
      %p147 = scmp.eq.s32.totalorder %s37, 0
      %p148 = por %p146, %p147
      %s150 = sadd.s32 %s149, 1
      %p153 = scmp.eq.s32.totalorder %s31, 3
      %p154 = scmp.ne.s32.totalorder %s149, %s151
      %p155 = scmp.eq.s32.totalorder %s31, 0
      %p156 = por %p154, %p155
      %p157 = scmp.ne.s32.totalorder %s149, %s151
      %p158 = scmp.eq.s32.totalorder %s36, 3
      %p159 = por %p157, %p158
      %p160 = scmp.ne.s32.totalorder %s151, %s152
      %p161 = scmp.eq.s32.totalorder %s36, 0
      %p162 = por %p160, %p161
      %p163 = scmp.ne.s32.totalorder %s151, %s152
      %p164 = scmp.eq.s32.totalorder %s37, 3
      %p165 = por %p163, %p164
      %p167 = scmp.ne.s32.totalorder %s152, %s166
      %p168 = scmp.eq.s32.totalorder %s37, 0
      %p169 = por %p167, %p168
      %s171 = sadd.s32 %s170, 1
      %p174 = scmp.eq.s32.totalorder %s31, 3
      %p175 = scmp.ne.s32.totalorder %s170, %s172
      %p176 = scmp.eq.s32.totalorder %s31, 0
      %p177 = por %p175, %p176
      %p178 = scmp.ne.s32.totalorder %s170, %s172
      %p179 = scmp.eq.s32.totalorder %s36, 3
      %p180 = por %p178, %p179
      %p181 = scmp.ne.s32.totalorder %s172, %s173
      %p182 = scmp.eq.s32.totalorder %s36, 0
      %p183 = por %p181, %p182
      %p184 = scmp.ne.s32.totalorder %s172, %s173
      %p185 = scmp.eq.s32.totalorder %s37, 3
      %p186 = por %p184, %p185
      %p188 = scmp.ne.s32.totalorder %s173, %s187
      %p189 = scmp.eq.s32.totalorder %s37, 0
      %p190 = por %p188, %p189
      %s192 = sadd.s32 %s191, 1
      %p195 = scmp.eq.s32.totalorder %s31, 3
      %p196 = scmp.ne.s32.totalorder %s191, %s193
      %p197 = scmp.eq.s32.totalorder %s31, 0
      %p198 = por %p196, %p197
      %p199 = scmp.ne.s32.totalorder %s191, %s193
      %p200 = scmp.eq.s32.totalorder %s36, 3
      %p201 = por %p199, %p200
      %p202 = scmp.ne.s32.totalorder %s193, %s194
      %p203 = scmp.eq.s32.totalorder %s36, 0
      %p204 = por %p202, %p203
      %p205 = scmp.ne.s32.totalorder %s193, %s194
      %p206 = scmp.eq.s32.totalorder %s37, 3
      %p207 = por %p205, %p206
      %p209 = scmp.ne.s32.totalorder %s194, %s208
      %p210 = scmp.eq.s32.totalorder %s37, 0
      %p211 = por %p209, %p210
      %s213 = sadd.s32 %s212, 1
      %p216 = scmp.eq.s32.totalorder %s31, 3
      %p217 = scmp.ne.s32.totalorder %s212, %s214
      %p218 = scmp.eq.s32.totalorder %s31, 0
      %p219 = por %p217, %p218
      %p220 = scmp.ne.s32.totalorder %s212, %s214
      %p221 = scmp.eq.s32.totalorder %s36, 3
      %p222 = por %p220, %p221
      %p223 = scmp.ne.s32.totalorder %s214, %s215
      %p224 = scmp.eq.s32.totalorder %s36, 0
      %p225 = por %p223, %p224
      %p226 = scmp.ne.s32.totalorder %s214, %s215
      %p227 = scmp.eq.s32.totalorder %s37, 3
      %p228 = por %p226, %p227
      %p230 = scmp.ne.s32.totalorder %s215, %s229
      %p231 = scmp.eq.s32.totalorder %s37, 0
      %p232 = por %p230, %p231
      %s233 = ssub.s32 %s38, %s50
      %s234 = ssub.s32 %s39, %s46
      %s235 = sor.u32 %s233, %s234
      %p236 = scmp.eq.s32.totalorder %s235, 0
      %s238 = sadd.s32 %s237, 1
      %s239 = scalar_select %p236, %s237, %s238
      %p242 = pneg %p236
      %p243 = scmp.eq.s32.totalorder %s31, 3
      %p244 = por %p242, %p243
      %p245 = scmp.ne.s32.totalorder %s237, %s240
      %p246 = scmp.eq.s32.totalorder %s31, 0
      %p247 = por %p245, %p246
      %p248 = scmp.ne.s32.totalorder %s237, %s240
      %p249 = scmp.eq.s32.totalorder %s36, 3
      %p250 = por %p248, %p249
      %p251 = scmp.ne.s32.totalorder %s240, %s241
      %p252 = scmp.eq.s32.totalorder %s36, 0
      %p253 = por %p251, %p252
      %p254 = scmp.ne.s32.totalorder %s240, %s241
      %p255 = scmp.eq.s32.totalorder %s37, 3
      %p256 = por %p254, %p255
      %p258 = scmp.ne.s32.totalorder %s241, %s257
      %p259 = scmp.eq.s32.totalorder %s37, 0
      %p260 = por %p258, %p259
      %s261 = ssub.s32 %s38, %s50
      %p262 = scmp.eq.s32.totalorder %s261, 0
      %s264 = sadd.s32 %s263, 1
      %s265 = scalar_select %p262, %s263, %s264
      %p268 = pneg %p262
      %p269 = scmp.eq.s32.totalorder %s31, 3
      %p270 = por %p268, %p269
      %p271 = scmp.ne.s32.totalorder %s263, %s266
      %p272 = scmp.eq.s32.totalorder %s31, 0
      %p273 = por %p271, %p272
      %p274 = scmp.ne.s32.totalorder %s263, %s266
      %p275 = scmp.eq.s32.totalorder %s36, 3
      %p276 = por %p274, %p275
      %p277 = scmp.ne.s32.totalorder %s266, %s267
      %p278 = scmp.eq.s32.totalorder %s36, 0
      %p279 = por %p277, %p278
      %p280 = scmp.ne.s32.totalorder %s266, %s267
      %p281 = scmp.eq.s32.totalorder %s37, 3
      %p282 = por %p280, %p281
      %p284 = scmp.ne.s32.totalorder %s267, %s283
      %p285 = scmp.eq.s32.totalorder %s37, 0
      %p286 = por %p284, %p285
      %p287 = scmp.le.s32.totalorder 1, %s31
      %p288 = scmp.lt.s32.totalorder %s31, 5
      %p289 = pnand %p287, %p288
      %p290 = pneg %p289
      // Predicated region
      $region9: #{tpu_custom_call.1} parent=5 // pred_check
        _
      $region10: #{tpu_custom_call.1} parent=5 // pred_check_branch
        %292 = sbr.rel (%p289) target = $region12
      $region11: #{tpu_custom_call.1} parent=5 // pred_region
        %s293 = ssub.s32 %s31, 1
        // Predicated region
        $region13: #{tpu_custom_call.1} parent=11 // pred_check
          %p294 = pneg %p120
        $region14: #{tpu_custom_call.1} parent=11 // pred_check_branch
          %296 = sbr.rel (%p294) target = $region16
        $region15: #{tpu_custom_call.1} parent=11 // pred_region
          %s298 = ssub.s32 256, 256
          %299 = vsyncadd [#allocation9], %s298
          %s300 = sshll.u32 [#allocation10], 4
          %s301 = int_to_ptr.vmem [resolvable:$true] %s300
          %306 = dma.hbm_to_vmem [thread:$0]  %s2, 256, %s301, [#allocation9], 128, 128, 8
        $region16: #{tpu_custom_call.1} parent=11 // pred_fallthru
          _
        // Predicated region
        $region17: #{tpu_custom_call.1} parent=11 // pred_check
          %p307 = pneg %p141
        $region18: #{tpu_custom_call.1} parent=11 // pred_check_branch
          %309 = sbr.rel (%p307) target = $region20
        $region19: #{tpu_custom_call.1} parent=11 // pred_region
          %s311 = ssub.s32 256, 256
          %312 = vsyncadd [#allocation12], %s311
          %s313 = sshll.u32 [#allocation11], 4
          %s314 = int_to_ptr.vmem [resolvable:$true] %s313
          %319 = dma.hbm_to_vmem [thread:$0]  %s3, 256, %s314, [#allocation12], 128, 128, 8
        $region20: #{tpu_custom_call.1} parent=11 // pred_fallthru
          _
        // Predicated region
        $region21: #{tpu_custom_call.1} parent=11 // pred_check
          %p320 = pneg %p162
        $region22: #{tpu_custom_call.1} parent=11 // pred_check_branch
          %322 = sbr.rel (%p320) target = $region24
        $region23: #{tpu_custom_call.1} parent=11 // pred_region
          %s324 = ssub.s32 384, 384
          %325 = vsyncadd [#allocation12], %s324
          %s326 = sshll.u32 [#allocation13], 4
          %s327 = int_to_ptr.vmem [resolvable:$true] %s326
          %332 = dma.hbm_to_vmem [thread:$0]  %s4, 384, %s327, [#allocation12], 64, 64, 4
        $region24: #{tpu_custom_call.1} parent=11 // pred_fallthru
          _
        // Predicated region
        $region25: #{tpu_custom_call.1} parent=11 // pred_check
          %p333 = pneg %p183
        $region26: #{tpu_custom_call.1} parent=11 // pred_check_branch
          %335 = sbr.rel (%p333) target = $region28
        $region27: #{tpu_custom_call.1} parent=11 // pred_region
          %s337 = ssub.s32 768, 768
          %338 = vsyncadd [#allocation15], %s337
          %s339 = sshll.u32 [#allocation14], 4
          %s340 = int_to_ptr.vmem [resolvable:$true] %s339
          %345 = dma.hbm_to_vmem [thread:$0]  %s5, 768, %s340, [#allocation15], 128, 128, 8
        $region28: #{tpu_custom_call.1} parent=11 // pred_fallthru
          _
        // Predicated region
        $region29: #{tpu_custom_call.1} parent=11 // pred_check
          %p346 = pneg %p204
        $region30: #{tpu_custom_call.1} parent=11 // pred_check_branch
          %348 = sbr.rel (%p346) target = $region32
        $region31: #{tpu_custom_call.1} parent=11 // pred_region
          %s350 = ssub.s32 256, 256
          %351 = vsyncadd [#allocation15], %s350
          %s352 = sshll.u32 [#allocation16], 4
          %s353 = int_to_ptr.vmem [resolvable:$true] %s352
          %358 = dma.hbm_to_vmem [thread:$0]  %s6, 256, %s353, [#allocation15], 128, 128, 8
        $region32: #{tpu_custom_call.1} parent=11 // pred_fallthru
          _
        // Predicated region
        $region33: #{tpu_custom_call.1} parent=11 // pred_check
          %p359 = pneg %p225
        $region34: #{tpu_custom_call.1} parent=11 // pred_check_branch
          %361 = sbr.rel (%p359) target = $region36
        $region35: #{tpu_custom_call.1} parent=11 // pred_region
          %s363 = ssub.s32 256, 256
          %364 = vsyncadd [#allocation18], %s363
          %s365 = sshll.u32 [#allocation17], 4
          %s366 = int_to_ptr.vmem [resolvable:$true] %s365
          %371 = dma.hbm_to_vmem [thread:$0]  %s7, 256, %s366, [#allocation18], 128, 128, 8
        $region36: #{tpu_custom_call.1} parent=11 // pred_fallthru
          _
      $region12: #{tpu_custom_call.1} parent=5 // pred_fallthru
        _
      %p372 = scmp.lt.s32.totalorder %s31, 4
      // Predicated region
      $region37: #{tpu_custom_call.1} parent=5 // pred_check
        %p373 = pneg %p372
      $region38: #{tpu_custom_call.1} parent=5 // pred_check_branch
        %375 = sbr.rel (%p373) target = $region40
      $region39: #{tpu_custom_call.1} parent=5 // pred_region
        // Predicated region
        $region41: #{tpu_custom_call.1} parent=39 // pred_check
          %p376 = pneg %p65
        $region42: #{tpu_custom_call.1} parent=39 // pred_check_branch
          %378 = sbr.rel (%p376) target = $region44
        $region43: #{tpu_custom_call.1} parent=39 // pred_region
          %s379 = sand.u32 %s55, 1
          %s380 = scalar_lea.sflag [#allocation6], %s379
          %s381 = sand.u32 %s55, 1
          %s382 = smul.addr %s381, 16
          %s383 = scalar_lea.vmem [#allocation5], %s382
          %s385 = ssub.s32 256, 256
          %386 = vsyncadd %s380, %s385
          %s387 = smul.addr %s38, 4
          %s388 = sadd.s32 %s39, %s387
          %s389 = smul.addr %s388, 128
          %s390 = scalar_lea.hbm %s0, %s389
          %s391 = sshll.u32 %s383, 4
          %s392 = int_to_ptr.vmem [resolvable:$true] %s391
          %397 = dma.hbm_to_vmem [thread:$0]  %s390, 256, %s392, %s380, 256, 128, 8
        $region44: #{tpu_custom_call.1} parent=39 // pred_fallthru
          _
        // Predicated region
        $region45: #{tpu_custom_call.1} parent=39 // pred_check
          %p398 = pneg %p93
        $region46: #{tpu_custom_call.1} parent=39 // pred_check_branch
          %400 = sbr.rel (%p398) target = $region48
        $region47: #{tpu_custom_call.1} parent=39 // pred_region
          %s401 = sand.u32 %s31, 1
          %s402 = scalar_lea.sflag [#allocation9], %s401
          %s403 = sand.u32 %s83, 1
          %s404 = smul.addr %s403, 16
          %s405 = scalar_lea.vmem [#allocation8], %s404
          %s407 = ssub.s32 256, 256
          %408 = vsyncadd %s402, %s407
          %s409 = smul.addr %s39, 2
          %s410 = smul.addr %s38, 4
          %s411 = sadd.s32 %s409, %s410
          %s412 = smul.addr %s411, 128
          %s413 = scalar_lea.hbm %s1, %s412
          %s414 = sshll.u32 %s405, 4
          %s415 = int_to_ptr.vmem [resolvable:$true] %s414
          %420 = dma.hbm_to_vmem [thread:$0]  %s413, 256, %s415, %s402, 128, 128, 8
        $region48: #{tpu_custom_call.1} parent=39 // pred_fallthru
          _
      $region40: #{tpu_custom_call.1} parent=5 // pred_fallthru
        _
      %p421 = scmp.le.s32.totalorder 1, %s31
      %p422 = scmp.lt.s32.totalorder %s31, 5
      %p423 = pnand %p421, %p422
      %p424 = pneg %p423
      // Predicated region
      $region49: #{tpu_custom_call.1} parent=5 // pred_check
        _
      $region50: #{tpu_custom_call.1} parent=5 // pred_check_branch
        %426 = sbr.rel (%p423) target = $region52
      $region51: #{tpu_custom_call.1} parent=5 // pred_region
        %s427 = ssub.s32 %s31, 1
        %s428 = sand.u32 %s58, 1
        %s429 = scalar_lea.sflag [#allocation6], %s428
        %s430 = sand.u32 %s58, 1
        %s431 = smul.addr %s430, 16
        %s432 = scalar_lea.vmem [#allocation5], %s431
        // Predicated region
        $region53: #{tpu_custom_call.1} parent=51 // pred_check
          %p433 = pneg %p71
        $region54: #{tpu_custom_call.1} parent=51 // pred_check_branch
          %435 = sbr.rel (%p433) target = $region56
        $region55: #{tpu_custom_call.1} parent=51 // pred_region
          %436 = dma.done %s429, 256
        $region56: #{tpu_custom_call.1} parent=51 // pred_fallthru
          _
        %s437 = sand.u32 %s36, 1
        %s438 = scalar_lea.sflag [#allocation9], %s437
        %s439 = sand.u32 %s86, 1
        %s440 = smul.addr %s439, 16
        %s441 = scalar_lea.vmem [#allocation8], %s440
        // Predicated region
        $region57: #{tpu_custom_call.1} parent=51 // pred_check
          %p442 = pneg %p99
        $region58: #{tpu_custom_call.1} parent=51 // pred_check_branch
          %444 = sbr.rel (%p442) target = $region60
        $region59: #{tpu_custom_call.1} parent=51 // pred_region
          %445 = dma.done %s438, 256
        $region60: #{tpu_custom_call.1} parent=51 // pred_fallthru
          _
        // Predicated region
        $region61: #{tpu_custom_call.1} parent=51 // pred_check
          %p446 = pneg %p120
        $region62: #{tpu_custom_call.1} parent=51 // pred_check_branch
          %448 = sbr.rel (%p446) target = $region64
        $region63: #{tpu_custom_call.1} parent=51 // pred_region
          %449 = dma.done [#allocation9], 256
        $region64: #{tpu_custom_call.1} parent=51 // pred_fallthru
          _
        // Predicated region
        $region65: #{tpu_custom_call.1} parent=51 // pred_check
          %p450 = pneg %p141
        $region66: #{tpu_custom_call.1} parent=51 // pred_check_branch
          %452 = sbr.rel (%p450) target = $region68
        $region67: #{tpu_custom_call.1} parent=51 // pred_region
          %453 = dma.done [#allocation12], 256
        $region68: #{tpu_custom_call.1} parent=51 // pred_fallthru
          _
        // Predicated region
        $region69: #{tpu_custom_call.1} parent=51 // pred_check
          %p454 = pneg %p162
        $region70: #{tpu_custom_call.1} parent=51 // pred_check_branch
          %456 = sbr.rel (%p454) target = $region72
        $region71: #{tpu_custom_call.1} parent=51 // pred_region
          %457 = dma.done [#allocation12], 384
        $region72: #{tpu_custom_call.1} parent=51 // pred_fallthru
          _
        // Predicated region
        $region73: #{tpu_custom_call.1} parent=51 // pred_check
          %p458 = pneg %p183
        $region74: #{tpu_custom_call.1} parent=51 // pred_check_branch
          %460 = sbr.rel (%p458) target = $region76
        $region75: #{tpu_custom_call.1} parent=51 // pred_region
          %461 = dma.done [#allocation15], 768
        $region76: #{tpu_custom_call.1} parent=51 // pred_fallthru
          _
        // Predicated region
        $region77: #{tpu_custom_call.1} parent=51 // pred_check
          %p462 = pneg %p204
        $region78: #{tpu_custom_call.1} parent=51 // pred_check_branch
          %464 = sbr.rel (%p462) target = $region80
        $region79: #{tpu_custom_call.1} parent=51 // pred_region
          %465 = dma.done [#allocation15], 256
        $region80: #{tpu_custom_call.1} parent=51 // pred_fallthru
          _
        // Predicated region
        $region81: #{tpu_custom_call.1} parent=51 // pred_check
          %p466 = pneg %p225
        $region82: #{tpu_custom_call.1} parent=51 // pred_check_branch
          %468 = sbr.rel (%p466) target = $region84
        $region83: #{tpu_custom_call.1} parent=51 // pred_region
          %469 = dma.done [#allocation18], 256
        $region84: #{tpu_custom_call.1} parent=51 // pred_fallthru
          _
        %s470 = sand.u32 %s58, 1
        %s471 = scalar_lea.sflag [#allocation6], %s470
        %s472 = sand.u32 %s58, 1
        %s473 = smul.addr %s472, 16
        %s474 = scalar_lea.vmem [#allocation5], %s473
        %p475 = pneg %p71
        %p476 = pneg %p68
        %s477 = sand.u32 %s36, 1
        %s478 = scalar_lea.sflag [#allocation9], %s477
        %s479 = sand.u32 %s86, 1
        %s480 = smul.addr %s479, 16
        %s481 = scalar_lea.vmem [#allocation8], %s480
        %p482 = pneg %p99
        %p483 = pneg %p96
        %p484 = pneg %p120
        %p485 = pneg %p117
        %p486 = pneg %p141
        %p487 = pneg %p138
        %p488 = pneg %p162
        %p489 = pneg %p159
        %p490 = pneg %p183
        %p491 = pneg %p180
        %p492 = pneg %p204
        %p493 = pneg %p201
        %p494 = pneg %p225
        %p495 = pneg %p222
        %p496 = pneg %p253
        %p497 = pneg %p250
        %s498 = sand.u32 %s240, 1
        %s499 = scalar_lea.sflag [#allocation7], %s498
        %s500 = sand.u32 %s240, 1
        %s501 = smul.addr %s500, 8
        %s502 = scalar_lea.vmem [#allocation19], %s501
        %p503 = pneg %p279
        %p504 = pneg %p276
        %s505 = sand.u32 %s266, 1
        %s506 = scalar_lea.sflag [#allocation21], %s505
        %s507 = sand.u32 %s266, 1
        %s508 = smul.addr %s507, 16
        %s509 = scalar_lea.vmem [#allocation20], %s508
        %v511 = vld [vmem:[%s441] sm:$0xff]
        %v512 = vld [vmem:[%s441 + $0x8] sm:$0xff]
        %v513 = vld [vmem:[%s432] sm:$0xff]
        %v514 = vld [vmem:[%s432 + $0x8] sm:$0xff]
        %517 = vrot.lane.b32.xlu0 %v513, 17
        %v518 = vpop.permute.xlu0 %517
        %519 = vrot.lane.b32.xlu0 %v514, 17
        %v520 = vpop.permute.xlu0 %519
        %vm523 = vcmask 138240
        %v524 = vsel %vm523, %v511, %v518
        %v525 = vsel %vm523, %v512, %v520
        %v526 = vsel %vm523, %v518, %v511
        %v527 = vsel %vm523, %v520, %v512
        %v528 = vld [vmem:[#allocation10] sm:$0xff]
        %v529 = vld [vmem:[#allocation10 + $0x8] sm:$0xff]
        %v530 = vld [vmem:[#allocation11] sm:$0xff]
        %v531 = vld [vmem:[#allocation11 + $0x8] sm:$0xff]
        %v532 = vadd.f32 %v524, %v525
        %v533 = vrot.slane %v532, 4
        %v534 = vadd.f32 %v532, %v533
        %v535 = vrot.slane %v534, 2
        %v536 = vadd.f32 %v534, %v535
        %v537 = vrot.slane %v536, 1
        %v538 = vadd.f32 %v536, %v537
        %vm539 = vcmask 277504
        %v540 = vsel %vm539, %v526, 0.0
        %v541 = vsel %vm539, %v527, 0.0
        %v542 = vadd.f32 %v540, %v541
        %v543 = vrot.slane %v542, 4
        %v544 = vadd.f32 %v542, %v543
        %v545 = vrot.slane %v544, 2
        %v546 = vadd.f32 %v544, %v545
        %v547 = vrot.slane %v546, 1
        %v548 = vadd.f32 %v546, %v547
        %v549 = vrcp.pop 16.0
        %v550 = vmul.f32 %v538, %v549
        %v551 = vmul.f32 %v548, %v549
        %v552 = vsub.f32 %v524, %v550
        %v553 = vsub.f32 %v526, %v551
        %v554 = vsub.f32 %v525, %v550
        %v555 = vsub.f32 %v527, %v551
        %v556 = vmul.f32 %v552, %v552
        %v557 = vmul.f32 %v553, %v553
        %v558 = vmul.f32 %v554, %v554
        %v559 = vmul.f32 %v555, %v555
        %v560 = vadd.f32 %v556, %v558
        %v561 = vrot.slane %v560, 4
        %v562 = vadd.f32 %v560, %v561
        %v563 = vrot.slane %v562, 2
        %v564 = vadd.f32 %v562, %v563
        %v565 = vrot.slane %v564, 1
        %v566 = vadd.f32 %v564, %v565
        %v567 = vsel %vm539, %v557, 0.0
        %v568 = vsel %vm539, %v559, 0.0
        %v569 = vadd.f32 %v567, %v568
        %v570 = vrot.slane %v569, 4
        %v571 = vadd.f32 %v569, %v570
        %v572 = vrot.slane %v571, 2
        %v573 = vadd.f32 %v571, %v572
        %v574 = vrot.slane %v573, 1
        %v575 = vadd.f32 %v573, %v574
        %v576 = vmul.f32 %v566, %v549
        %v577 = vmul.f32 %v575, %v549
        %v578 = vadd.f32 %v576, 1e-05
        %v579 = vadd.f32 %v577, 1e-05
        %v580 = vrsqrt.pop %v578
        %v581 = vrsqrt.pop %v579
        %v582 = vmul.f32 %v552, %v580
        %v583 = vmul.f32 %v553, %v581
        %v584 = vmul.f32 %v554, %v580
        %v585 = vmul.f32 %v555, %v581
        %587 = vset.pattern.permute.xlu0 0
        %588 = vperm.xlu0 %587, %v528
        %v589 = vpop.permute.xlu0 %588
        %592 = vset.pattern.permute.xlu0 0
        %593 = vperm.xlu0 %592, %v529
        %v594 = vpop.permute.xlu0 %593
        %v596 = vmul.f32 %v582, %v589
        %v597 = vmul.f32 %v583, %v589
        %v598 = vmul.f32 %v584, %v594
        %v599 = vmul.f32 %v585, %v594
        %601 = vset.pattern.permute.xlu0 0
        %602 = vperm.xlu0 %601, %v530
        %v603 = vpop.permute.xlu0 %602
        %606 = vset.pattern.permute.xlu0 0
        %607 = vperm.xlu0 %606, %v531
        %v608 = vpop.permute.xlu0 %607
        %v610 = vadd.f32 %v596, %v603
        %v611 = vadd.f32 %v597, %v603
        %v612 = vadd.f32 %v598, %v608
        %v613 = vadd.f32 %v599, %v608
        %v614 = vld [vmem:[#allocation13] sm:$0xf]
        %v615 = vld [vmem:[#allocation13 + $0x4] sm:$0xf]
        %v616 = vld [vmem:[#allocation13 + $0x8] sm:$0xf]
        %v617 = vld [vmem:[#allocation13 + $0xc] sm:$0xf]
        %v618 = vld [vmem:[#allocation13 + $0x10] sm:$0xf]
        %v619 = vld [vmem:[#allocation13 + $0x14] sm:$0xf]
        %v620 = vpack.c.bf16 %v612, %v610
        %v621 = vpack.c.bf16 %v613, %v611
        %v628 = vunpack.c.l.b16 %v614
        %v629 = vunpack.c.l.b16 %v615
        %v630 = vunpack.c.l.b16 %v616
        %v631 = vunpack.c.l.b16 %v617
        %v632 = vunpack.c.l.b16 %v618
        %v633 = vunpack.c.l.b16 %v619
        %v634 = vpack.c.b16 %v629, %v628
        %v635 = vpack.c.b16 %v631, %v630
        %v636 = vpack.c.b16 %v633, %v632
        %vm637 = vcmask 130048
        %v639 = vsel %vm637, %v634, 0
        %v642 = vsel %vm637, %v635, 0
        %v645 = vsel %vm637, %v636, 0
        %647 = vmatprep.subr.bf16.mxu0 %v621
        %648 = vmatpush1.bf16.msra.mxu0 %v620
        %649 = vmatprep.subr.bf16.mxu0 0
        %650 = vmatpush1.bf16.msra.mxu0 0
        %651 = vmatprep.subr.bf16.mxu0 0
        %652 = vmatpush1.bf16.msra.mxu0 0
        %653 = vmatprep.subr.bf16.mxu0 0
        %654 = vmatpush1.bf16.msra.mxu0 0
        %655 = vmatprep.subr.bf16.mxu0 0
        %656 = vmatpush1.bf16.msra.mxu0 0
        %657 = vmatprep.subr.bf16.mxu0 0
        %658 = vmatpush1.bf16.msra.mxu0 0
        %659 = vmatprep.subr.bf16.mxu0 0
        %660 = vmatpush1.bf16.msra.mxu0 0
        %661 = vmatprep.subr.bf16.mxu0 0
        %662 = vmatpush1.bf16.msra.mxu0 0
        %663 = vmatprep.subr.bf16.mxu0 0
        %664 = vmatpush1.bf16.msra.mxu0 0
        %665 = vmatprep.subr.bf16.mxu0 0
        %666 = vmatpush1.bf16.msra.mxu0 0
        %667 = vmatprep.subr.bf16.mxu0 0
        %668 = vmatpush1.bf16.msra.mxu0 0
        %669 = vmatprep.subr.bf16.mxu0 0
        %670 = vmatpush1.bf16.msra.mxu0 0
        %671 = vmatprep.subr.bf16.mxu0 0
        %672 = vmatpush1.bf16.msra.mxu0 0
        %673 = vmatprep.subr.bf16.mxu0 0
        %674 = vmatpush1.bf16.msra.mxu0 0
        %675 = vmatprep.subr.bf16.mxu0 0
        %676 = vmatpush1.bf16.msra.mxu0 0
        %677 = vmatprep.subr.bf16.mxu0 0
        %678 = vmatpush1.bf16.msra.mxu0 0
        %679 = vmatprep.mubr.bf16.mxu0 0
        %680 = vmatmul.mubr.bf16.gmra.mrb[0].mxu0 %v639
        %v681 = vpop.f32.mrb[0].mxu0
        %v682 = vadd.f32 0.0, %v681
        %v683 = vpop.f32.mrb[0].mxu0
        %v684 = vadd.f32 0.0, %v683
        %v685 = vpop.f32.mrb[0].mxu0
        %v686 = vadd.f32 0.0, %v685
        %v687 = vpop.f32.mrb[0].mxu0
        %v688 = vadd.f32 0.0, %v687
        %689 = vmatprep.mubr.bf16.mxu0 0
        %690 = vmatmul.mubr.bf16.gmra.mrb[0].mxu0 %v642
        %v691 = vpop.f32.mrb[0].mxu0
        %v692 = vadd.f32 0.0, %v691
        %v693 = vpop.f32.mrb[0].mxu0
        %v694 = vadd.f32 0.0, %v693
        %v695 = vpop.f32.mrb[0].mxu0
        %v696 = vadd.f32 0.0, %v695
        %v697 = vpop.f32.mrb[0].mxu0
        %v698 = vadd.f32 0.0, %v697
        %699 = vmatprep.mubr.bf16.mxu0 0
        %700 = vmatmul.mubr.bf16.gmra.mrb[0].mxu0 %v645
        %v701 = vpop.f32.mrb[0].mxu0
        %v702 = vadd.f32 0.0, %v701
        %v703 = vpop.f32.mrb[0].mxu0
        %v704 = vadd.f32 0.0, %v703
        %v705 = vpop.f32.mrb[0].mxu0
        %v706 = vadd.f32 0.0, %v705
        %v707 = vpop.f32.mrb[0].mxu0
        %v708 = vadd.f32 0.0, %v707
        %709 = vdwg.mxu0
        %v710 = vld [vmem:[#allocation14] sm:$0xff]
        %v711 = vld [vmem:[#allocation14 + $0x8] sm:$0xff]
        %v712 = vld [vmem:[#allocation14 + $0x10] sm:$0xff]
        %v713 = vld [vmem:[#allocation14 + $0x18] sm:$0xff]
        %v714 = vld [vmem:[#allocation14 + $0x20] sm:$0xff]
        %v715 = vld [vmem:[#allocation14 + $0x28] sm:$0xff]
        %p716 = scmp.eq.s32.totalorder %s41, 0
        %p717 = scmp.eq.s32.totalorder %s41, 1
        %v718 = vlaneseq
        %v719 = vand.u32 %v718, 127
        %v720 = vadd.s32 %v719, 128
        %v721 = vsub.s32 %v719, 1
        %v722 = vsub.s32 %v720, 1
        %vm723 = vcmp.lt.s32.totalorder %v721, 0
        %v724 = vsub.s32 0, %v721
        %v725 = vsel %vm723, %v724, %v721
        %v726 = vshrl.u32 %v725, 4
        %v727 = vand.u32 %v725, 15
        %v728 = vsub.s32 0, %v727
        %v729 = vsel %vm723, %v728, %v727
        %vm730 = vcmp.lt.s32.totalorder %v722, 0
        %v731 = vsub.s32 0, %v722
        %v732 = vsel %vm730, %v731, %v722
        %v733 = vshrl.u32 %v732, 4
        %v734 = vand.u32 %v732, 15
        %v735 = vsub.s32 0, %v734
        %v736 = vsel %vm730, %v735, %v734
        %vm737 = vcmp.ne.s32.totalorder %v729, 0
        %vm738 = vcmp.ne.s32.totalorder %v736, 0
        %vm739 = vcmp.lt.s32.totalorder %v729, 0
        %vm740 = vcmp.lt.s32.totalorder %v736, 0
        %vm741 = vmand %vm739, %vm737
        %vm742 = vmand %vm740, %vm738
        %v743 = vadd.s32 %v729, 16
        %v744 = vadd.s32 %v736, 16
        %v745 = vsel %vm741, %v743, %v729
        %v746 = vsel %vm742, %v744, %v736
        %s747 = scalar_select %p716, 0.0, 1.0
        %s748 = scalar_select %p717, 0.0, 1.0
        %vm749 = vcmp.ge.s32.totalorder %v719, 1
        %vm750 = vcmp.ge.s32.totalorder %v720, 1
        %vm751 = vcmp.lt.s32.totalorder %v719, 17
        %vm752 = vcmp.lt.s32.totalorder %v720, 17
        %vm753 = vmand %vm749, %vm751
        %vm754 = vmand %vm750, %vm752
        %v755 = vstv %s747
        %v756 = vsel %vm753, %v755, 1.0
        %v757 = vsel %vm754, %v755, 1.0
        %vm758 = vcmp.ge.s32.totalorder %v719, 145
        %vm759 = vcmp.ge.s32.totalorder %v720, 145
        %vm760 = vcmp.lt.s32.totalorder %v719, 161
        %vm761 = vcmp.lt.s32.totalorder %v720, 161
        %vm762 = vmand %vm758, %vm760
        %vm763 = vmand %vm759, %vm761
        %v764 = vstv %s748
        %v765 = vsel %vm762, %v764, 1.0
        %v766 = vsel %vm763, %v764, 1.0
        %v767 = vmul.f32 %v756, %v765
        %v768 = vmul.f32 %v757, %v766
        %v769 = vmul.f32 %v682, %v767
        %v770 = vmul.f32 %v684, %v768
        %v771 = vmul.f32 %v686, %v767
        %v772 = vmul.f32 %v688, %v768
        %v773 = vmul.f32 %v692, %v767
        %v774 = vmul.f32 %v694, %v768
        %v775 = vmul.f32 %v696, %v767
        %v776 = vmul.f32 %v698, %v768
        %v777 = vmul.f32 %v702, %v767
        %v778 = vmul.f32 %v704, %v768
        %v779 = vmul.f32 %v706, %v767
        %v780 = vmul.f32 %v708, %v768
        %vm781 = vcmp.ne.s32.totalorder %v745, 15
        %vm782 = vcmp.ne.s32.totalorder %v746, 15
        %v783 = vsel %vm781, 1, 0
        %v784 = vsel %vm782, 1, 0
        %v785 = vcvt.s32.f32 %v783
        %v786 = vcvt.s32.f32 %v784
        %v787 = vmul.f32 %v769, %v785
        %v788 = vmul.f32 %v770, %v786
        %v789 = vmul.f32 %v771, %v785
        %v790 = vmul.f32 %v772, %v786
        %v791 = vmul.f32 %v773, %v785
        %v792 = vmul.f32 %v774, %v786
        %v793 = vmul.f32 %v775, %v785
        %v794 = vmul.f32 %v776, %v786
        %v795 = vmul.f32 %v777, %v785
        %v796 = vmul.f32 %v778, %v786
        %v797 = vmul.f32 %v779, %v785
        %v798 = vmul.f32 %v780, %v786
        %vm799 = vcmp.ne.s32.totalorder %v745, 0
        %vm800 = vcmp.ne.s32.totalorder %v746, 0
        %v801 = vsel %vm799, 1, 0
        %v802 = vsel %vm800, 1, 0
        %v803 = vcvt.s32.f32 %v801
        %v804 = vcvt.s32.f32 %v802
        %v805 = vmul.f32 %v769, %v803
        %v806 = vmul.f32 %v770, %v804
        %v807 = vmul.f32 %v771, %v803
        %v808 = vmul.f32 %v772, %v804
        %v809 = vmul.f32 %v773, %v803
        %v810 = vmul.f32 %v774, %v804
        %v811 = vmul.f32 %v775, %v803
        %v812 = vmul.f32 %v776, %v804
        %v813 = vmul.f32 %v777, %v803
        %v814 = vmul.f32 %v778, %v804
        %v815 = vmul.f32 %v779, %v803
        %v816 = vmul.f32 %v780, %v804
        %818 = vset.pattern.permute.xlu0 0
        %819 = vperm.xlu0 %818, %v710
        %v820 = vpop.permute.xlu0 %819
        %823 = vset.pattern.permute.xlu0 0
        %824 = vperm.xlu0 %823, %v711
        %v825 = vpop.permute.xlu0 %824
        %828 = vset.pattern.permute.xlu0 0
        %829 = vperm.xlu0 %828, %v712
        %v830 = vpop.permute.xlu0 %829
        %833 = vset.pattern.permute.xlu0 0
        %834 = vperm.xlu0 %833, %v713
        %v835 = vpop.permute.xlu0 %834
        %838 = vset.pattern.permute.xlu0 0
        %839 = vperm.xlu0 %838, %v714
        %v840 = vpop.permute.xlu0 %839
        %843 = vset.pattern.permute.xlu0 0
        %844 = vperm.xlu0 %843, %v715
        %v845 = vpop.permute.xlu0 %844
        %v847 = vmul.f32 %v820, %v787
        %v848 = vmul.f32 %v825, %v789
        %v849 = vmul.f32 %v830, %v791
        %v850 = vmul.f32 %v835, %v793
        %v851 = vmul.f32 %v840, %v795
        %v852 = vmul.f32 %v845, %v797
        %853 = vset.pattern.permute.xlu0 1
        %854 = vperm.xlu0 %853, %v710
        %v855 = vpop.permute.xlu0 %854
        %857 = vset.pattern.permute.xlu0 1
        %858 = vperm.xlu0 %857, %v711
        %v859 = vpop.permute.xlu0 %858
        %861 = vset.pattern.permute.xlu0 1
        %862 = vperm.xlu0 %861, %v712
        %v863 = vpop.permute.xlu0 %862
        %865 = vset.pattern.permute.xlu0 1
        %866 = vperm.xlu0 %865, %v713
        %v867 = vpop.permute.xlu0 %866
        %869 = vset.pattern.permute.xlu0 1
        %870 = vperm.xlu0 %869, %v714
        %v871 = vpop.permute.xlu0 %870
        %873 = vset.pattern.permute.xlu0 1
        %874 = vperm.xlu0 %873, %v715
        %v875 = vpop.permute.xlu0 %874
        %v877 = vmul.f32 %v855, %v769
        %v878 = vmul.f32 %v855, %v770
        %v879 = vmul.f32 %v859, %v771
        %v880 = vmul.f32 %v859, %v772
        %v881 = vmul.f32 %v863, %v773
        %v882 = vmul.f32 %v863, %v774
        %v883 = vmul.f32 %v867, %v775
        %v884 = vmul.f32 %v867, %v776
        %v885 = vmul.f32 %v871, %v777
        %v886 = vmul.f32 %v871, %v778
        %v887 = vmul.f32 %v875, %v779
        %v888 = vmul.f32 %v875, %v780
        %901 = vrot.lane.b32.xlu0 %v877, 127
        %v902 = vpop.permute.xlu0 %901
        %903 = vrot.lane.b32.xlu0 %v878, 127
        %v904 = vpop.permute.xlu0 %903
        %905 = vrot.lane.b32.xlu0 %v879, 127
        %v906 = vpop.permute.xlu0 %905
        %907 = vrot.lane.b32.xlu0 %v880, 127
        %v908 = vpop.permute.xlu0 %907
        %909 = vrot.lane.b32.xlu0 %v881, 127
        %v910 = vpop.permute.xlu0 %909
        %911 = vrot.lane.b32.xlu0 %v882, 127
        %v912 = vpop.permute.xlu0 %911
        %913 = vrot.lane.b32.xlu0 %v883, 127
        %v914 = vpop.permute.xlu0 %913
        %915 = vrot.lane.b32.xlu0 %v884, 127
        %v916 = vpop.permute.xlu0 %915
        %917 = vrot.lane.b32.xlu0 %v885, 127
        %v918 = vpop.permute.xlu0 %917
        %919 = vrot.lane.b32.xlu0 %v886, 127
        %v920 = vpop.permute.xlu0 %919
        %921 = vrot.lane.b32.xlu0 %v887, 127
        %v922 = vpop.permute.xlu0 %921
        %923 = vrot.lane.b32.xlu0 %v888, 127
        %v924 = vpop.permute.xlu0 %923
        %vm925 = vcmask 1039360
        %v926 = vsel %vm925, %v902, %v904
        %v927 = vsel %vm925, %v906, %v908
        %v928 = vsel %vm925, %v910, %v912
        %v929 = vsel %vm925, %v914, %v916
        %v930 = vsel %vm925, %v918, %v920
        %v931 = vsel %vm925, %v922, %v924
        %v938 = vadd.f32 %v847, %v926
        %v939 = vadd.f32 %v848, %v927
        %v940 = vadd.f32 %v849, %v928
        %v941 = vadd.f32 %v850, %v929
        %v942 = vadd.f32 %v851, %v930
        %v943 = vadd.f32 %v852, %v931
        %944 = vset.pattern.permute.xlu0 2
        %945 = vperm.xlu0 %944, %v710
        %v946 = vpop.permute.xlu0 %945
        %948 = vset.pattern.permute.xlu0 2
        %949 = vperm.xlu0 %948, %v711
        %v950 = vpop.permute.xlu0 %949
        %952 = vset.pattern.permute.xlu0 2
        %953 = vperm.xlu0 %952, %v712
        %v954 = vpop.permute.xlu0 %953
        %956 = vset.pattern.permute.xlu0 2
        %957 = vperm.xlu0 %956, %v713
        %v958 = vpop.permute.xlu0 %957
        %960 = vset.pattern.permute.xlu0 2
        %961 = vperm.xlu0 %960, %v714
        %v962 = vpop.permute.xlu0 %961
        %964 = vset.pattern.permute.xlu0 2
        %965 = vperm.xlu0 %964, %v715
        %v966 = vpop.permute.xlu0 %965
        %v968 = vmul.f32 %v946, %v805
        %v969 = vmul.f32 %v946, %v806
        %v970 = vmul.f32 %v950, %v807
        %v971 = vmul.f32 %v950, %v808
        %v972 = vmul.f32 %v954, %v809
        %v973 = vmul.f32 %v954, %v810
        %v974 = vmul.f32 %v958, %v811
        %v975 = vmul.f32 %v958, %v812
        %v976 = vmul.f32 %v962, %v813
        %v977 = vmul.f32 %v962, %v814
        %v978 = vmul.f32 %v966, %v815
        %v979 = vmul.f32 %v966, %v816
        %992 = vrot.lane.b32.xlu0 %v968, 126
        %v993 = vpop.permute.xlu0 %992
        %994 = vrot.lane.b32.xlu0 %v969, 126
        %v995 = vpop.permute.xlu0 %994
        %996 = vrot.lane.b32.xlu0 %v970, 126
        %v997 = vpop.permute.xlu0 %996
        %998 = vrot.lane.b32.xlu0 %v971, 126
        %v999 = vpop.permute.xlu0 %998
        %1000 = vrot.lane.b32.xlu0 %v972, 126
        %v1001 = vpop.permute.xlu0 %1000
        %1002 = vrot.lane.b32.xlu0 %v973, 126
        %v1003 = vpop.permute.xlu0 %1002
        %1004 = vrot.lane.b32.xlu0 %v974, 126
        %v1005 = vpop.permute.xlu0 %1004
        %1006 = vrot.lane.b32.xlu0 %v975, 126
        %v1007 = vpop.permute.xlu0 %1006
        %1008 = vrot.lane.b32.xlu0 %v976, 126
        %v1009 = vpop.permute.xlu0 %1008
        %1010 = vrot.lane.b32.xlu0 %v977, 126
        %v1011 = vpop.permute.xlu0 %1010
        %1012 = vrot.lane.b32.xlu0 %v978, 126
        %v1013 = vpop.permute.xlu0 %1012
        %1014 = vrot.lane.b32.xlu0 %v979, 126
        %v1015 = vpop.permute.xlu0 %1014
        %vm1016 = vcmask 1031168
        %v1017 = vsel %vm1016, %v993, %v995
        %v1018 = vsel %vm1016, %v997, %v999
        %v1019 = vsel %vm1016, %v1001, %v1003
        %v1020 = vsel %vm1016, %v1005, %v1007
        %v1021 = vsel %vm1016, %v1009, %v1011
        %v1022 = vsel %vm1016, %v1013, %v1015
        %v1029 = vadd.f32 %v938, %v1017
        %v1030 = vadd.f32 %v939, %v1018
        %v1031 = vadd.f32 %v940, %v1019
        %v1032 = vadd.f32 %v941, %v1020
        %v1033 = vadd.f32 %v942, %v1021
        %v1034 = vadd.f32 %v943, %v1022
        %1035 = vset.pattern.permute.xlu0 3
        %1036 = vperm.xlu0 %1035, %v710
        %v1037 = vpop.permute.xlu0 %1036
        %1039 = vset.pattern.permute.xlu0 3
        %1040 = vperm.xlu0 %1039, %v711
        %v1041 = vpop.permute.xlu0 %1040
        %1043 = vset.pattern.permute.xlu0 3
        %1044 = vperm.xlu0 %1043, %v712
        %v1045 = vpop.permute.xlu0 %1044
        %1047 = vset.pattern.permute.xlu0 3
        %1048 = vperm.xlu0 %1047, %v713
        %v1049 = vpop.permute.xlu0 %1048
        %1051 = vset.pattern.permute.xlu0 3
        %1052 = vperm.xlu0 %1051, %v714
        %v1053 = vpop.permute.xlu0 %1052
        %1055 = vset.pattern.permute.xlu0 3
        %1056 = vperm.xlu0 %1055, %v715
        %v1057 = vpop.permute.xlu0 %1056
        %v1059 = vmul.f32 %v1037, %v787
        %v1060 = vmul.f32 %v1037, %v788
        %v1061 = vmul.f32 %v1041, %v789
        %v1062 = vmul.f32 %v1041, %v790
        %v1063 = vmul.f32 %v1045, %v791
        %v1064 = vmul.f32 %v1045, %v792
        %v1065 = vmul.f32 %v1049, %v793
        %v1066 = vmul.f32 %v1049, %v794
        %v1067 = vmul.f32 %v1053, %v795
        %v1068 = vmul.f32 %v1053, %v796
        %v1069 = vmul.f32 %v1057, %v797
        %v1070 = vmul.f32 %v1057, %v798
        %1083 = vrot.lane.b32.xlu0 %v1059, 112
        %v1084 = vpop.permute.xlu0 %1083
        %1085 = vrot.lane.b32.xlu0 %v1060, 112
        %v1086 = vpop.permute.xlu0 %1085
        %1087 = vrot.lane.b32.xlu0 %v1061, 112
        %v1088 = vpop.permute.xlu0 %1087
        %1089 = vrot.lane.b32.xlu0 %v1062, 112
        %v1090 = vpop.permute.xlu0 %1089
        %1091 = vrot.lane.b32.xlu0 %v1063, 112
        %v1092 = vpop.permute.xlu0 %1091
        %1093 = vrot.lane.b32.xlu0 %v1064, 112
        %v1094 = vpop.permute.xlu0 %1093
        %1095 = vrot.lane.b32.xlu0 %v1065, 112
        %v1096 = vpop.permute.xlu0 %1095
        %1097 = vrot.lane.b32.xlu0 %v1066, 112
        %v1098 = vpop.permute.xlu0 %1097
        %1099 = vrot.lane.b32.xlu0 %v1067, 112
        %v1100 = vpop.permute.xlu0 %1099
        %1101 = vrot.lane.b32.xlu0 %v1068, 112
        %v1102 = vpop.permute.xlu0 %1101
        %1103 = vrot.lane.b32.xlu0 %v1069, 112
        %v1104 = vpop.permute.xlu0 %1103
        %1105 = vrot.lane.b32.xlu0 %v1070, 112
        %v1106 = vpop.permute.xlu0 %1105
        %vm1107 = vcmask 916480
        %v1108 = vsel %vm1107, %v1084, %v1086
        %v1109 = vsel %vm1107, %v1088, %v1090
        %v1110 = vsel %vm1107, %v1092, %v1094
        %v1111 = vsel %vm1107, %v1096, %v1098
        %v1112 = vsel %vm1107, %v1100, %v1102
        %v1113 = vsel %vm1107, %v1104, %v1106
        %v1120 = vadd.f32 %v1029, %v1108
        %v1121 = vadd.f32 %v1030, %v1109
        %v1122 = vadd.f32 %v1031, %v1110
        %v1123 = vadd.f32 %v1032, %v1111
        %v1124 = vadd.f32 %v1033, %v1112
        %v1125 = vadd.f32 %v1034, %v1113
        %1126 = vset.pattern.permute.xlu0 4
        %1127 = vperm.xlu0 %1126, %v710
        %v1128 = vpop.permute.xlu0 %1127
        %1130 = vset.pattern.permute.xlu0 4
        %1131 = vperm.xlu0 %1130, %v711
        %v1132 = vpop.permute.xlu0 %1131
        %1134 = vset.pattern.permute.xlu0 4
        %1135 = vperm.xlu0 %1134, %v712
        %v1136 = vpop.permute.xlu0 %1135
        %1138 = vset.pattern.permute.xlu0 4
        %1139 = vperm.xlu0 %1138, %v713
        %v1140 = vpop.permute.xlu0 %1139
        %1142 = vset.pattern.permute.xlu0 4
        %1143 = vperm.xlu0 %1142, %v714
        %v1144 = vpop.permute.xlu0 %1143
        %1146 = vset.pattern.permute.xlu0 4
        %1147 = vperm.xlu0 %1146, %v715
        %v1148 = vpop.permute.xlu0 %1147
        %v1150 = vmul.f32 %v1128, %v769
        %v1151 = vmul.f32 %v1128, %v770
        %v1152 = vmul.f32 %v1132, %v771
        %v1153 = vmul.f32 %v1132, %v772
        %v1154 = vmul.f32 %v1136, %v773
        %v1155 = vmul.f32 %v1136, %v774
        %v1156 = vmul.f32 %v1140, %v775
        %v1157 = vmul.f32 %v1140, %v776
        %v1158 = vmul.f32 %v1144, %v777
        %v1159 = vmul.f32 %v1144, %v778
        %v1160 = vmul.f32 %v1148, %v779
        %v1161 = vmul.f32 %v1148, %v780
        %1174 = vrot.lane.b32.xlu0 %v1150, 111
        %v1175 = vpop.permute.xlu0 %1174
        %1176 = vrot.lane.b32.xlu0 %v1151, 111
        %v1177 = vpop.permute.xlu0 %1176
        %1178 = vrot.lane.b32.xlu0 %v1152, 111
        %v1179 = vpop.permute.xlu0 %1178
        %1180 = vrot.lane.b32.xlu0 %v1153, 111
        %v1181 = vpop.permute.xlu0 %1180
        %1182 = vrot.lane.b32.xlu0 %v1154, 111
        %v1183 = vpop.permute.xlu0 %1182
        %1184 = vrot.lane.b32.xlu0 %v1155, 111
        %v1185 = vpop.permute.xlu0 %1184
        %1186 = vrot.lane.b32.xlu0 %v1156, 111
        %v1187 = vpop.permute.xlu0 %1186
        %1188 = vrot.lane.b32.xlu0 %v1157, 111
        %v1189 = vpop.permute.xlu0 %1188
        %1190 = vrot.lane.b32.xlu0 %v1158, 111
        %v1191 = vpop.permute.xlu0 %1190
        %1192 = vrot.lane.b32.xlu0 %v1159, 111
        %v1193 = vpop.permute.xlu0 %1192
        %1194 = vrot.lane.b32.xlu0 %v1160, 111
        %v1195 = vpop.permute.xlu0 %1194
        %1196 = vrot.lane.b32.xlu0 %v1161, 111
        %v1197 = vpop.permute.xlu0 %1196
        %vm1198 = vcmask 908288
        %v1199 = vsel %vm1198, %v1175, %v1177
        %v1200 = vsel %vm1198, %v1179, %v1181
        %v1201 = vsel %vm1198, %v1183, %v1185
        %v1202 = vsel %vm1198, %v1187, %v1189
        %v1203 = vsel %vm1198, %v1191, %v1193
        %v1204 = vsel %vm1198, %v1195, %v1197
        %v1211 = vadd.f32 %v1120, %v1199
        %v1212 = vadd.f32 %v1121, %v1200
        %v1213 = vadd.f32 %v1122, %v1201
        %v1214 = vadd.f32 %v1123, %v1202
        %v1215 = vadd.f32 %v1124, %v1203
        %v1216 = vadd.f32 %v1125, %v1204
        %1217 = vset.pattern.permute.xlu0 5
        %1218 = vperm.xlu0 %1217, %v710
        %v1219 = vpop.permute.xlu0 %1218
        %1221 = vset.pattern.permute.xlu0 5
        %1222 = vperm.xlu0 %1221, %v711
        %v1223 = vpop.permute.xlu0 %1222
        %1225 = vset.pattern.permute.xlu0 5
        %1226 = vperm.xlu0 %1225, %v712
        %v1227 = vpop.permute.xlu0 %1226
        %1229 = vset.pattern.permute.xlu0 5
        %1230 = vperm.xlu0 %1229, %v713
        %v1231 = vpop.permute.xlu0 %1230
        %1233 = vset.pattern.permute.xlu0 5
        %1234 = vperm.xlu0 %1233, %v714
        %v1235 = vpop.permute.xlu0 %1234
        %1237 = vset.pattern.permute.xlu0 5
        %1238 = vperm.xlu0 %1237, %v715
        %v1239 = vpop.permute.xlu0 %1238
        %v1241 = vmul.f32 %v1219, %v805
        %v1242 = vmul.f32 %v1219, %v806
        %v1243 = vmul.f32 %v1223, %v807
        %v1244 = vmul.f32 %v1223, %v808
        %v1245 = vmul.f32 %v1227, %v809
        %v1246 = vmul.f32 %v1227, %v810
        %v1247 = vmul.f32 %v1231, %v811
        %v1248 = vmul.f32 %v1231, %v812
        %v1249 = vmul.f32 %v1235, %v813
        %v1250 = vmul.f32 %v1235, %v814
        %v1251 = vmul.f32 %v1239, %v815
        %v1252 = vmul.f32 %v1239, %v816
        %1265 = vrot.lane.b32.xlu0 %v1241, 110
        %v1266 = vpop.permute.xlu0 %1265
        %1267 = vrot.lane.b32.xlu0 %v1242, 110
        %v1268 = vpop.permute.xlu0 %1267
        %1269 = vrot.lane.b32.xlu0 %v1243, 110
        %v1270 = vpop.permute.xlu0 %1269
        %1271 = vrot.lane.b32.xlu0 %v1244, 110
        %v1272 = vpop.permute.xlu0 %1271
        %1273 = vrot.lane.b32.xlu0 %v1245, 110
        %v1274 = vpop.permute.xlu0 %1273
        %1275 = vrot.lane.b32.xlu0 %v1246, 110
        %v1276 = vpop.permute.xlu0 %1275
        %1277 = vrot.lane.b32.xlu0 %v1247, 110
        %v1278 = vpop.permute.xlu0 %1277
        %1279 = vrot.lane.b32.xlu0 %v1248, 110
        %v1280 = vpop.permute.xlu0 %1279
        %1281 = vrot.lane.b32.xlu0 %v1249, 110
        %v1282 = vpop.permute.xlu0 %1281
        %1283 = vrot.lane.b32.xlu0 %v1250, 110
        %v1284 = vpop.permute.xlu0 %1283
        %1285 = vrot.lane.b32.xlu0 %v1251, 110
        %v1286 = vpop.permute.xlu0 %1285
        %1287 = vrot.lane.b32.xlu0 %v1252, 110
        %v1288 = vpop.permute.xlu0 %1287
        %vm1289 = vcmask 900096
        %v1290 = vsel %vm1289, %v1266, %v1268
        %v1291 = vsel %vm1289, %v1270, %v1272
        %v1292 = vsel %vm1289, %v1274, %v1276
        %v1293 = vsel %vm1289, %v1278, %v1280
        %v1294 = vsel %vm1289, %v1282, %v1284
        %v1295 = vsel %vm1289, %v1286, %v1288
        %v1302 = vadd.f32 %v1211, %v1290
        %v1303 = vadd.f32 %v1212, %v1291
        %v1304 = vadd.f32 %v1213, %v1292
        %v1305 = vadd.f32 %v1214, %v1293
        %v1306 = vadd.f32 %v1215, %v1294
        %v1307 = vadd.f32 %v1216, %v1295
        %1308 = vset.pattern.permute.xlu0 6
        %1309 = vperm.xlu0 %1308, %v710
        %v1310 = vpop.permute.xlu0 %1309
        %1312 = vset.pattern.permute.xlu0 6
        %1313 = vperm.xlu0 %1312, %v711
        %v1314 = vpop.permute.xlu0 %1313
        %1316 = vset.pattern.permute.xlu0 6
        %1317 = vperm.xlu0 %1316, %v712
        %v1318 = vpop.permute.xlu0 %1317
        %1320 = vset.pattern.permute.xlu0 6
        %1321 = vperm.xlu0 %1320, %v713
        %v1322 = vpop.permute.xlu0 %1321
        %1324 = vset.pattern.permute.xlu0 6
        %1325 = vperm.xlu0 %1324, %v714
        %v1326 = vpop.permute.xlu0 %1325
        %1328 = vset.pattern.permute.xlu0 6
        %1329 = vperm.xlu0 %1328, %v715
        %v1330 = vpop.permute.xlu0 %1329
        %v1332 = vmul.f32 %v1310, %v787
        %v1333 = vmul.f32 %v1310, %v788
        %v1334 = vmul.f32 %v1314, %v789
        %v1335 = vmul.f32 %v1314, %v790
        %v1336 = vmul.f32 %v1318, %v791
        %v1337 = vmul.f32 %v1318, %v792
        %v1338 = vmul.f32 %v1322, %v793
        %v1339 = vmul.f32 %v1322, %v794
        %v1340 = vmul.f32 %v1326, %v795
        %v1341 = vmul.f32 %v1326, %v796
        %v1342 = vmul.f32 %v1330, %v797
        %v1343 = vmul.f32 %v1330, %v798
        %1356 = vrot.lane.b32.xlu0 %v1332, 96
        %v1357 = vpop.permute.xlu0 %1356
        %1358 = vrot.lane.b32.xlu0 %v1333, 96
        %v1359 = vpop.permute.xlu0 %1358
        %1360 = vrot.lane.b32.xlu0 %v1334, 96
        %v1361 = vpop.permute.xlu0 %1360
        %1362 = vrot.lane.b32.xlu0 %v1335, 96
        %v1363 = vpop.permute.xlu0 %1362
        %1364 = vrot.lane.b32.xlu0 %v1336, 96
        %v1365 = vpop.permute.xlu0 %1364
        %1366 = vrot.lane.b32.xlu0 %v1337, 96
        %v1367 = vpop.permute.xlu0 %1366
        %1368 = vrot.lane.b32.xlu0 %v1338, 96
        %v1369 = vpop.permute.xlu0 %1368
        %1370 = vrot.lane.b32.xlu0 %v1339, 96
        %v1371 = vpop.permute.xlu0 %1370
        %1372 = vrot.lane.b32.xlu0 %v1340, 96
        %v1373 = vpop.permute.xlu0 %1372
        %1374 = vrot.lane.b32.xlu0 %v1341, 96
        %v1375 = vpop.permute.xlu0 %1374
        %1376 = vrot.lane.b32.xlu0 %v1342, 96
        %v1377 = vpop.permute.xlu0 %1376
        %1378 = vrot.lane.b32.xlu0 %v1343, 96
        %v1379 = vpop.permute.xlu0 %1378
        %vm1380 = vcmask 785408
        %v1381 = vsel %vm1380, %v1357, %v1359
        %v1382 = vsel %vm1380, %v1361, %v1363
        %v1383 = vsel %vm1380, %v1365, %v1367
        %v1384 = vsel %vm1380, %v1369, %v1371
        %v1385 = vsel %vm1380, %v1373, %v1375
        %v1386 = vsel %vm1380, %v1377, %v1379
        %v1393 = vadd.f32 %v1302, %v1381
        %v1394 = vadd.f32 %v1303, %v1382
        %v1395 = vadd.f32 %v1304, %v1383
        %v1396 = vadd.f32 %v1305, %v1384
        %v1397 = vadd.f32 %v1306, %v1385
        %v1398 = vadd.f32 %v1307, %v1386
        %1399 = vset.pattern.permute.xlu0 7
        %1400 = vperm.xlu0 %1399, %v710
        %v1401 = vpop.permute.xlu0 %1400
        %1403 = vset.pattern.permute.xlu0 7
        %1404 = vperm.xlu0 %1403, %v711
        %v1405 = vpop.permute.xlu0 %1404
        %1407 = vset.pattern.permute.xlu0 7
        %1408 = vperm.xlu0 %1407, %v712
        %v1409 = vpop.permute.xlu0 %1408
        %1411 = vset.pattern.permute.xlu0 7
        %1412 = vperm.xlu0 %1411, %v713
        %v1413 = vpop.permute.xlu0 %1412
        %1415 = vset.pattern.permute.xlu0 7
        %1416 = vperm.xlu0 %1415, %v714
        %v1417 = vpop.permute.xlu0 %1416
        %1419 = vset.pattern.permute.xlu0 7
        %1420 = vperm.xlu0 %1419, %v715
        %v1421 = vpop.permute.xlu0 %1420
        %v1423 = vmul.f32 %v1401, %v769
        %v1424 = vmul.f32 %v1401, %v770
        %v1425 = vmul.f32 %v1405, %v771
        %v1426 = vmul.f32 %v1405, %v772
        %v1427 = vmul.f32 %v1409, %v773
        %v1428 = vmul.f32 %v1409, %v774
        %v1429 = vmul.f32 %v1413, %v775
        %v1430 = vmul.f32 %v1413, %v776
        %v1431 = vmul.f32 %v1417, %v777
        %v1432 = vmul.f32 %v1417, %v778
        %v1433 = vmul.f32 %v1421, %v779
        %v1434 = vmul.f32 %v1421, %v780
        %1447 = vrot.lane.b32.xlu0 %v1423, 95
        %v1448 = vpop.permute.xlu0 %1447
        %1449 = vrot.lane.b32.xlu0 %v1424, 95
        %v1450 = vpop.permute.xlu0 %1449
        %1451 = vrot.lane.b32.xlu0 %v1425, 95
        %v1452 = vpop.permute.xlu0 %1451
        %1453 = vrot.lane.b32.xlu0 %v1426, 95
        %v1454 = vpop.permute.xlu0 %1453
        %1455 = vrot.lane.b32.xlu0 %v1427, 95
        %v1456 = vpop.permute.xlu0 %1455
        %1457 = vrot.lane.b32.xlu0 %v1428, 95
        %v1458 = vpop.permute.xlu0 %1457
        %1459 = vrot.lane.b32.xlu0 %v1429, 95
        %v1460 = vpop.permute.xlu0 %1459
        %1461 = vrot.lane.b32.xlu0 %v1430, 95
        %v1462 = vpop.permute.xlu0 %1461
        %1463 = vrot.lane.b32.xlu0 %v1431, 95
        %v1464 = vpop.permute.xlu0 %1463
        %1465 = vrot.lane.b32.xlu0 %v1432, 95
        %v1466 = vpop.permute.xlu0 %1465
        %1467 = vrot.lane.b32.xlu0 %v1433, 95
        %v1468 = vpop.permute.xlu0 %1467
        %1469 = vrot.lane.b32.xlu0 %v1434, 95
        %v1470 = vpop.permute.xlu0 %1469
        %vm1471 = vcmask 777216
        %v1472 = vsel %vm1471, %v1448, %v1450
        %v1473 = vsel %vm1471, %v1452, %v1454
        %v1474 = vsel %vm1471, %v1456, %v1458
        %v1475 = vsel %vm1471, %v1460, %v1462
        %v1476 = vsel %vm1471, %v1464, %v1466
        %v1477 = vsel %vm1471, %v1468, %v1470
        %v1484 = vadd.f32 %v1393, %v1472
        %v1485 = vadd.f32 %v1394, %v1473
        %v1486 = vadd.f32 %v1395, %v1474
        %v1487 = vadd.f32 %v1396, %v1475
        %v1488 = vadd.f32 %v1397, %v1476
        %v1489 = vadd.f32 %v1398, %v1477
        %1490 = vset.pattern.permute.xlu0 8
        %1491 = vperm.xlu0 %1490, %v710
        %v1492 = vpop.permute.xlu0 %1491
        %1494 = vset.pattern.permute.xlu0 8
        %1495 = vperm.xlu0 %1494, %v711
        %v1496 = vpop.permute.xlu0 %1495
        %1498 = vset.pattern.permute.xlu0 8
        %1499 = vperm.xlu0 %1498, %v712
        %v1500 = vpop.permute.xlu0 %1499
        %1502 = vset.pattern.permute.xlu0 8
        %1503 = vperm.xlu0 %1502, %v713
        %v1504 = vpop.permute.xlu0 %1503
        %1506 = vset.pattern.permute.xlu0 8
        %1507 = vperm.xlu0 %1506, %v714
        %v1508 = vpop.permute.xlu0 %1507
        %1510 = vset.pattern.permute.xlu0 8
        %1511 = vperm.xlu0 %1510, %v715
        %v1512 = vpop.permute.xlu0 %1511
        %v1514 = vmul.f32 %v1492, %v805
        %v1515 = vmul.f32 %v1492, %v806
        %v1516 = vmul.f32 %v1496, %v807
        %v1517 = vmul.f32 %v1496, %v808
        %v1518 = vmul.f32 %v1500, %v809
        %v1519 = vmul.f32 %v1500, %v810
        %v1520 = vmul.f32 %v1504, %v811
        %v1521 = vmul.f32 %v1504, %v812
        %v1522 = vmul.f32 %v1508, %v813
        %v1523 = vmul.f32 %v1508, %v814
        %v1524 = vmul.f32 %v1512, %v815
        %v1525 = vmul.f32 %v1512, %v816
        %1538 = vrot.lane.b32.xlu0 %v1514, 94
        %v1539 = vpop.permute.xlu0 %1538
        %1540 = vrot.lane.b32.xlu0 %v1515, 94
        %v1541 = vpop.permute.xlu0 %1540
        %1542 = vrot.lane.b32.xlu0 %v1516, 94
        %v1543 = vpop.permute.xlu0 %1542
        %1544 = vrot.lane.b32.xlu0 %v1517, 94
        %v1545 = vpop.permute.xlu0 %1544
        %1546 = vrot.lane.b32.xlu0 %v1518, 94
        %v1547 = vpop.permute.xlu0 %1546
        %1548 = vrot.lane.b32.xlu0 %v1519, 94
        %v1549 = vpop.permute.xlu0 %1548
        %1550 = vrot.lane.b32.xlu0 %v1520, 94
        %v1551 = vpop.permute.xlu0 %1550
        %1552 = vrot.lane.b32.xlu0 %v1521, 94
        %v1553 = vpop.permute.xlu0 %1552
        %1554 = vrot.lane.b32.xlu0 %v1522, 94
        %v1555 = vpop.permute.xlu0 %1554
        %1556 = vrot.lane.b32.xlu0 %v1523, 94
        %v1557 = vpop.permute.xlu0 %1556
        %1558 = vrot.lane.b32.xlu0 %v1524, 94
        %v1559 = vpop.permute.xlu0 %1558
        %1560 = vrot.lane.b32.xlu0 %v1525, 94
        %v1561 = vpop.permute.xlu0 %1560
        %vm1562 = vcmask 769024
        %v1563 = vsel %vm1562, %v1539, %v1541
        %v1564 = vsel %vm1562, %v1543, %v1545
        %v1565 = vsel %vm1562, %v1547, %v1549
        %v1566 = vsel %vm1562, %v1551, %v1553
        %v1567 = vsel %vm1562, %v1555, %v1557
        %v1568 = vsel %vm1562, %v1559, %v1561
        %v1575 = vadd.f32 %v1484, %v1563
        %v1576 = vadd.f32 %v1485, %v1564
        %v1577 = vadd.f32 %v1486, %v1565
        %v1578 = vadd.f32 %v1487, %v1566
        %v1579 = vadd.f32 %v1488, %v1567
        %v1580 = vadd.f32 %v1489, %v1568
        %v1581 = vpack.c.bf16 %v1580, %v1579
        %v1583 = vunpack.c.l.b16 %v1581
        %v1584 = vunpack.c.h.b16 %v1581
        %v1585 = vpack.c.b16 %v1583, %v1583
        %v1586 = vpack.c.b16 %v1584, %v1584
        %1589 = vst [vmem:[%s502] sm:$0xf] %v1585
        %1590 = vst [vmem:[%s502 + $0x4] sm:$0xf] %v1586
        // Predicated region
        $region85: #{tpu_custom_call.1} parent=51 // pred_check
          %p1591 = pneg %p716
        $region86: #{tpu_custom_call.1} parent=51 // pred_check_branch
          %1593 = sbr.rel (%p1591) target = $region88
        $region87: #{tpu_custom_call.1} parent=51 // pred_region
          %1594 = vst.msk [vmem:[#allocation2] sm:$0xff] %vm637, 0.0
          %1595 = vst.msk [vmem:[#allocation2 + $0x8] sm:$0xff] %vm637, 0.0
          %vm1596 = vcmask 7168
          %1597 = vst.msk [vmem:[#allocation3] sm:$0xff] %vm1596, 0.0
          %1598 = vst.msk [vmem:[#allocation3 + $0x8] sm:$0xff] %vm1596, 0.0
          %1599 = vst.msk [vmem:[#allocation4] sm:$0xff] %vm1596, 0.0
          %1600 = vst.msk [vmem:[#allocation4 + $0x8] sm:$0xff] %vm1596, 0.0
        $region88: #{tpu_custom_call.1} parent=51 // pred_fallthru
          _
        %v1601 = vld [vmem:[#allocation3] sm:$0xff]
        %v1602 = vld [vmem:[#allocation3 + $0x8] sm:$0xff]
        %v1603 = vmul.f32 %v1575, %v1575
        %v1604 = vmul.f32 %v1576, %v1576
        %1605 = vadd.xlane.f32.xlu0 %v1603
        %v1606 = vpop.xlane.xlu0 %1605
        %1607 = vadd.xlane.f32.xlu0 %v1604
        %v1608 = vpop.xlane.xlu0 %1607
        %v1609 = vadd.f32 %v1601, %v1606
        %v1610 = vadd.f32 %v1602, %v1608
        %vm1611 = vcmask 7168
        %1612 = vst.msk [vmem:[#allocation3] sm:$0xff] %vm1611, %v1609
        %1613 = vst.msk [vmem:[#allocation3 + $0x8] sm:$0xff] %vm1611, %v1610
        %v1614 = vld [vmem:[#allocation4] sm:$0xff]
        %v1615 = vld [vmem:[#allocation4 + $0x8] sm:$0xff]
        %v1616 = vmul.f32 %v1577, %v1577
        %v1617 = vmul.f32 %v1578, %v1578
        %1618 = vadd.xlane.f32.xlu0 %v1616
        %v1619 = vpop.xlane.xlu0 %1618
        %1620 = vadd.xlane.f32.xlu0 %v1617
        %v1621 = vpop.xlane.xlu0 %1620
        %v1622 = vadd.f32 %v1614, %v1619
        %v1623 = vadd.f32 %v1615, %v1621
        %1624 = vst.msk [vmem:[#allocation4] sm:$0xff] %vm1611, %v1622
        %1625 = vst.msk [vmem:[#allocation4 + $0x8] sm:$0xff] %vm1611, %v1623
        %v1626 = vld [vmem:[#allocation2] sm:$0xff]
        %v1627 = vld [vmem:[#allocation2 + $0x8] sm:$0xff]
        %v1628 = vpack.c.bf16 %v1576, %v1575
        %v1629 = vpack.c.bf16 %v1578, %v1577
        %1630 = vmatprep.subr.bf16.mxu0 0
        %1631 = vmatpush1.bf16.xpose.msra.mxu0 %v1629
        %1632 = vmatprep.subr.bf16.mxu0 0
        %1633 = vmatpush1.bf16.xpose.msra.mxu0 0
        %1634 = vmatprep.subr.bf16.mxu0 0
        %1635 = vmatpush1.bf16.xpose.msra.mxu0 0
        %1636 = vmatprep.subr.bf16.mxu0 0
        %1637 = vmatpush1.bf16.xpose.msra.mxu0 0
        %1638 = vmatprep.subr.bf16.mxu0 0
        %1639 = vmatpush1.bf16.xpose.msra.mxu0 0
        %1640 = vmatprep.subr.bf16.mxu0 0
        %1641 = vmatpush1.bf16.xpose.msra.mxu0 0
        %1642 = vmatprep.subr.bf16.mxu0 0
        %1643 = vmatpush1.bf16.xpose.msra.mxu0 0
        %1644 = vmatprep.subr.bf16.mxu0 0
        %1645 = vmatpush1.bf16.xpose.msra.mxu0 0
        %1646 = vmatprep.subr.bf16.mxu0 0
        %1647 = vmatpush1.bf16.xpose.msra.mxu0 0
        %1648 = vmatprep.subr.bf16.mxu0 0
        %1649 = vmatpush1.bf16.xpose.msra.mxu0 0
        %1650 = vmatprep.subr.bf16.mxu0 0
        %1651 = vmatpush1.bf16.xpose.msra.mxu0 0
        %1652 = vmatprep.subr.bf16.mxu0 0
        %1653 = vmatpush1.bf16.xpose.msra.mxu0 0
        %1654 = vmatprep.subr.bf16.mxu0 0
        %1655 = vmatpush1.bf16.xpose.msra.mxu0 0
        %1656 = vmatprep.subr.bf16.mxu0 0
        %1657 = vmatpush1.bf16.xpose.msra.mxu0 0
        %1658 = vmatprep.subr.bf16.mxu0 0
        %1659 = vmatpush1.bf16.xpose.msra.mxu0 0
        %1660 = vmatprep.subr.bf16.mxu0 0
        %1661 = vmatpush1.bf16.xpose.msra.mxu0 0
        %1662 = vmatprep.mubr.bf16.mxu0 0
        %1663 = vmatmul.mubr.bf16.gmra.mrb[0].mxu0 %v1628
        %v1664 = vpop.f32.mrb[0].mxu0
        %v1665 = vadd.f32 0.0, %v1664
        %v1666 = vpop.f32.mrb[0].mxu0
        %v1667 = vpop.f32.mrb[0].mxu0
        %v1668 = vadd.f32 0.0, %v1667
        %v1669 = vpop.f32.mrb[0].mxu0
        %1670 = vdwg.mxu0
        %v1671 = vadd.f32 %v1626, %v1665
        %v1672 = vadd.f32 %v1627, %v1668
        %1673 = vst.msk [vmem:[#allocation2] sm:$0xff] %vm637, %v1671
        %1674 = vst.msk [vmem:[#allocation2 + $0x8] sm:$0xff] %vm637, %v1672
        // Predicated region
        $region89: #{tpu_custom_call.1} parent=51 // pred_check
          %p1675 = pneg %p717
        $region90: #{tpu_custom_call.1} parent=51 // pred_check_branch
          %1677 = sbr.rel (%p1675) target = $region92
        $region91: #{tpu_custom_call.1} parent=51 // pred_region
          %v1678 = vld [vmem:[#allocation3] sm:$0xff]
          %v1679 = vld [vmem:[#allocation3 + $0x8] sm:$0xff]
          %v1680 = vmax.f32 %v1678, 1e-24
          %v1681 = vmax.f32 %v1679, 1e-24
          %v1682 = vrsqrt.pop %v1680
          %v1683 = vrsqrt.pop %v1681
          %v1684 = vld [vmem:[#allocation4] sm:$0xff]
          %v1685 = vld [vmem:[#allocation4 + $0x8] sm:$0xff]
          %v1686 = vmax.f32 %v1684, 1e-24
          %v1687 = vmax.f32 %v1685, 1e-24
          %v1688 = vrsqrt.pop %v1686
          %v1689 = vrsqrt.pop %v1687
          %v1690 = vld [vmem:[#allocation2] sm:$0xff]
          %v1691 = vld [vmem:[#allocation2 + $0x8] sm:$0xff]
          %1693 = vset.pattern.permute.xlu0 0
          %1694 = vperm.xlu0 %1693, %v1682
          %v1695 = vpop.permute.xlu0 %1694
          %1698 = vset.pattern.permute.xlu0 0
          %1699 = vperm.xlu0 %1698, %v1683
          %v1700 = vpop.permute.xlu0 %1699
          %v1702 = vmul.f32 %v1690, %v1695
          %v1703 = vmul.f32 %v1691, %v1700
          %1704 = vxpose.xlu0.b32.start [1/16] %v1688, 128
          %1705 = vxpose.xlu0.b32.cont [2/16] %v1689, 128
          %1706 = vxpose.xlu0.b32.cont [3/16] 0.0, 128
          %1707 = vxpose.xlu0.b32.cont [4/16] 0.0, 128
          %1708 = vxpose.xlu0.b32.cont [5/16] 0.0, 128
          %1709 = vxpose.xlu0.b32.cont [6/16] 0.0, 128
          %1710 = vxpose.xlu0.b32.cont [7/16] 0.0, 128
          %1711 = vxpose.xlu0.b32.cont [8/16] 0.0, 128
          %1712 = vxpose.xlu0.b32.cont [9/16] 0.0, 128
          %1713 = vxpose.xlu0.b32.cont [10/16] 0.0, 128
          %1714 = vxpose.xlu0.b32.cont [11/16] 0.0, 128
          %1715 = vxpose.xlu0.b32.cont [12/16] 0.0, 128
          %1716 = vxpose.xlu0.b32.cont [13/16] 0.0, 128
          %1717 = vxpose.xlu0.b32.cont [14/16] 0.0, 128
          %1718 = vxpose.xlu0.b32.cont [15/16] 0.0, 128
          %1719 = vxpose.xlu0.b32.end [16/16] 0.0, 128
          %v1720 = vpop.trf.xlu0
          %v1721 = vpop.trf.xlu0
          %v1722 = vpop.trf.xlu0
          %v1723 = vpop.trf.xlu0
          %v1724 = vpop.trf.xlu0
          %v1725 = vpop.trf.xlu0
          %v1726 = vpop.trf.xlu0
          %v1727 = vpop.trf.xlu0
          %v1728 = vpop.trf.xlu0
          %v1729 = vpop.trf.xlu0
          %v1730 = vpop.trf.xlu0
          %v1731 = vpop.trf.xlu0
          %v1732 = vpop.trf.xlu0
          %v1733 = vpop.trf.xlu0
          %v1734 = vpop.trf.xlu0
          %v1735 = vpop.trf.xlu0
          %v1736 = vlaneseq
          %v1737 = vshrl.u32 %v1736, 7
          %v1738 = vsub.s32 0, %v1737
          %v1739 = vrot.slane %v1720, %v1738
          %v1740 = vmul.f32 %v1702, %v1739
          %v1741 = vmul.f32 %v1703, %v1739
          %v1742 = vld [vmem:[#allocation16] sm:$0xff]
          %v1743 = vld [vmem:[#allocation16 + $0x8] sm:$0xff]
          %1745 = vset.pattern.permute.xlu0 0
          %1746 = vperm.xlu0 %1745, %v1742
          %v1747 = vpop.permute.xlu0 %1746
          %1750 = vset.pattern.permute.xlu0 0
          %1751 = vperm.xlu0 %1750, %v1743
          %v1752 = vpop.permute.xlu0 %1751
          %v1754 = vmul.f32 %v1740, %v1747
          %v1755 = vmul.f32 %v1741, %v1752
          %v1756 = vld [vmem:[#allocation17] sm:$0xff]
          %v1757 = vld [vmem:[#allocation17 + $0x8] sm:$0xff]
          %vm1758 = vcmp.gt.f32.partialorder %v1756, 0.5
          %vm1759 = vcmp.gt.f32.partialorder %v1757, 0.5
          %v1760 = vsel %vm1758, %v1754, -1e+30
          %v1761 = vsel %vm1759, %v1755, -1e+30
          %v1762 = vsel %vm637, %v1760, -inf
          %1763 = vmax.xlane.f32.xlu0 %v1762
          %v1764 = vpop.xlane.xlu0 %1763
          %v1765 = vsel %vm637, %v1761, -inf
          %1766 = vmax.xlane.f32.xlu0 %v1765
          %v1767 = vpop.xlane.xlu0 %1766
          %v1768 = vsub.f32 %v1760, %v1764
          %v1769 = vsub.f32 %v1761, %v1767
          %v1770 = vmul.f32 %v1768, 1.442695
          %v1771 = vpow.pop %v1770
          %v1772 = vmul.f32 %v1769, 1.442695
          %v1773 = vpow.pop %v1772
          %v1774 = vsel %vm637, %v1771, 0.0
          %1775 = vadd.xlane.f32.xlu0 %v1774
          %v1776 = vpop.xlane.xlu0 %1775
          %v1777 = vsel %vm637, %v1773, 0.0
          %1778 = vadd.xlane.f32.xlu0 %v1777
          %v1779 = vpop.xlane.xlu0 %1778
          %v1780 = vrcp.pop %v1776
          %v1781 = vmul.f32 %v1771, %v1780
          %v1782 = vrcp.pop %v1779
          %v1783 = vmul.f32 %v1773, %v1782
          %1784 = vst.msk [vmem:[%s509] sm:$0xff] %vm637, %v1781
          %1785 = vst.msk [vmem:[%s509 + $0x8] sm:$0xff] %vm637, %v1783
        $region92: #{tpu_custom_call.1} parent=51 // pred_fallthru
          _
        %s1786 = sand.u32 %s240, 1
        %s1787 = scalar_lea.sflag [#allocation7], %s1786
        %s1788 = sand.u32 %s240, 1
        %s1789 = smul.addr %s1788, 8
        %s1790 = scalar_lea.vmem [#allocation19], %s1789
        %s1791 = sand.u32 %s266, 1
        %s1792 = scalar_lea.sflag [#allocation21], %s1791
        %s1793 = sand.u32 %s266, 1
        %s1794 = smul.addr %s1793, 16
        %s1795 = scalar_lea.vmem [#allocation20], %s1794
        // Predicated region
        $region93: #{tpu_custom_call.1} parent=51 // pred_check
          %p1796 = pneg %p250
        $region94: #{tpu_custom_call.1} parent=51 // pred_check_branch
          %1798 = sbr.rel (%p1796) target = $region96
        $region95: #{tpu_custom_call.1} parent=51 // pred_region
          %s1800 = ssub.s32 128, 128
          %1801 = vsyncadd %s1787, %s1800
          %s1802 = smul.addr %s40, 4
          %s1803 = sadd.s32 %s41, %s1802
          %s1804 = smul.addr %s1803, 64
          %s1805 = scalar_lea.hbm %s8, %s1804
          %s1806 = sshll.u32 %s1790, 4
          %s1807 = int_to_ptr.vmem [resolvable:$true] %s1806
          %1812 = dma.vmem_to_hbm [thread:$0]  %s1807, 128, %s1805, %s1787, 64, 128, 4
        $region96: #{tpu_custom_call.1} parent=51 // pred_fallthru
          _
        // Predicated region
        $region97: #{tpu_custom_call.1} parent=51 // pred_check
          %p1813 = pneg %p276
        $region98: #{tpu_custom_call.1} parent=51 // pred_check_branch
          %1815 = sbr.rel (%p1813) target = $region100
        $region99: #{tpu_custom_call.1} parent=51 // pred_region
          %s1817 = ssub.s32 256, 256
          %1818 = vsyncadd %s1792, %s1817
          %s1819 = smul.addr %s40, 2
          %s1820 = smul.addr %s1819, 128
          %s1821 = scalar_lea.hbm %s9, %s1820
          %s1822 = sshll.u32 %s1795, 4
          %s1823 = int_to_ptr.vmem [resolvable:$true] %s1822
          %1828 = dma.vmem_to_hbm [thread:$0]  %s1823, 256, %s1821, %s1792, 128, 128, 8
        $region100: #{tpu_custom_call.1} parent=51 // pred_fallthru
          _
      $region52: #{tpu_custom_call.1} parent=5 // pred_fallthru
        _
      %p1829 = scmp.le.s32.totalorder 2, %s31
      // Predicated region
      $region101: #{tpu_custom_call.1} parent=5 // pred_check
        %p1830 = pneg %p1829
      $region102: #{tpu_custom_call.1} parent=5 // pred_check_branch
        %1832 = sbr.rel (%p1830) target = $region104
      $region103: #{tpu_custom_call.1} parent=5 // pred_region
        %s1833 = ssub.s32 %s31, 2
        // Predicated region
        $region105: #{tpu_custom_call.1} parent=103 // pred_check
          %p1834 = pneg %p256
        $region106: #{tpu_custom_call.1} parent=103 // pred_check_branch
          %1836 = sbr.rel (%p1834) target = $region108
        $region107: #{tpu_custom_call.1} parent=103 // pred_region
          %s1837 = sand.u32 %s241, 1
          %s1838 = scalar_lea.sflag [#allocation7], %s1837
          %s1839 = sand.u32 %s241, 1
          %s1840 = smul.addr %s1839, 8
          %s1841 = scalar_lea.vmem [#allocation19], %s1840
          %1842 = dma.done %s1838, 128
        $region108: #{tpu_custom_call.1} parent=103 // pred_fallthru
          _
        // Predicated region
        $region109: #{tpu_custom_call.1} parent=103 // pred_check
          %p1843 = pneg %p282
        $region110: #{tpu_custom_call.1} parent=103 // pred_check_branch
          %1845 = sbr.rel (%p1843) target = $region112
        $region111: #{tpu_custom_call.1} parent=103 // pred_region
          %s1846 = sand.u32 %s267, 1
          %s1847 = scalar_lea.sflag [#allocation21], %s1846
          %s1848 = sand.u32 %s267, 1
          %s1849 = smul.addr %s1848, 16
          %s1850 = scalar_lea.vmem [#allocation20], %s1849
          %1851 = dma.done %s1847, 256
        $region112: #{tpu_custom_call.1} parent=103 // pred_fallthru
          _
      $region104: #{tpu_custom_call.1} parent=5 // pred_fallthru
        _
    $region6: #{tpu_custom_call.1} parent=1 // loop_footer
      %s35 = sadd.s32 1, %s31
    $region7: #{tpu_custom_call.1} parent=1 // loop_footer_branch
      %30 = sbr.rel target = $region3
    $region8: #{tpu_custom_call.1} parent=1 // loop_exit
      _
    %1852 = vsyncpa [#allocation6], 1
    %s1853 = scalar_lea.sflag [#allocation6], 1
    %1854 = vsyncpa %s1853, 1
    %1855 = vsyncpa [#allocation9], 1
    %s1856 = scalar_lea.sflag [#allocation9], 1
    %1857 = vsyncpa %s1856, 1
    %1858 = vsyncpa [#allocation12], 1
    %1859 = vsyncpa [#allocation15], 1
    %1860 = vsyncpa [#allocation18], 1
    %1861 = vsyncpa [#allocation7], 1
    %s1862 = scalar_lea.sflag [#allocation7], 1
    %1863 = vsyncpa %s1862, 1
    %1864 = vsyncpa [#allocation21], 1
    %s1865 = scalar_lea.sflag [#allocation21], 1
    %1866 = vsyncpa %s1865, 1

</llo_original>
